<compile_context>
chip_gen: v7x
topology: tpu7x:2x2x1
jax: 0.10.0
libtpu: 0.0.40
codegen_flags: <defaults>
</compile_context>

<pallas_src>
import jax
import jax.numpy as jnp
from jax.experimental import pallas as pl
from jax.experimental.pallas import tpu as pltpu


def make_lstm_kernel(num_layers, hidden, seq_len, batch):
    """Builds the Pallas kernel body for a given layer count / sizes."""
    H = hidden
    T = seq_len
    B = batch

    def kernel(*refs):
        # ---- unpack refs ----------------------------------------------------
        hist_ref = refs[0]            # (T*B, 1)  time-major flattened historic
        static_ref = refs[1]          # (B, S)
        w_enc_ref = refs[2]           # (S, O)
        layer_refs = refs[3:3 + 3 * num_layers]   # per layer: w_ih, w_hh, b
        w_out_ref = refs[3 + 3 * num_layers]      # (H, OUT)
        b_out_ref = refs[4 + 3 * num_layers]      # (1, OUT)
        out_ref = refs[5 + 3 * num_layers]        # (B, OUT)

        # ---- static encoder + softmax (time-invariant) -----------------------
        logits = jnp.dot(static_ref[...], w_enc_ref[...],
                         preferred_element_type=jnp.float32)          # (B, O)
        logits = logits - jnp.max(logits, axis=-1, keepdims=True)
        e = jnp.exp(logits)
        xs = e * pl.reciprocal(jnp.sum(e, axis=-1, keepdims=True),
                               approx=True)                            # (B, O)

        # ---- one LSTM layer (PyTorch gate order: i, f, g, o) -----------------
        # gates_flat: (T*B, 4H) precomputed input projection incl. bias.
        def lstm_layer(gates_flat, w_hh_ref, collect_outputs):
            w_hh = w_hh_ref[...]                                       # (H, 4H)
            h = jnp.zeros((B, H), jnp.float32)
            c = jnp.zeros((B, H), jnp.float32)
            outs = []
            for t in range(T):  # static unroll: only h @ w_hh is serial
                gates = gates_flat[t * B:(t + 1) * B, :] + jnp.dot(
                    h, w_hh, preferred_element_type=jnp.float32)       # (B, 4H)
                sig = jax.nn.sigmoid(gates)          # full-vreg sigmoid
                i_g = sig[:, 0 * H:1 * H]
                f_g = sig[:, 1 * H:2 * H]
                o_g = sig[:, 3 * H:4 * H]
                g_g = jnp.tanh(gates[:, 2 * H:3 * H])
                c = f_g * c + i_g * g_g
                h = o_g * jnp.tanh(c)
                if collect_outputs:
                    outs.append(h)
            return h, outs

        # ---- layer 0: hoisted input projection --------------------------------
        w_ih0_ref, w_hh0_ref, b0_ref = (layer_refs[0], layer_refs[1],
                                        layer_refs[2])
        # static (time-invariant) part + bias, computed once:
        static_gates = (jnp.dot(xs, w_ih0_ref[1:, :],
                                preferred_element_type=jnp.float32)
                        + b0_ref[...])                                  # (B, 4H)
        # historic part as one broadcast outer product over all T steps:
        gates0 = (hist_ref[...] * w_ih0_ref[0:1, :]
                  + jnp.concatenate([static_gates] * T, axis=0))        # (T*B,4H)
        h_top, prev = lstm_layer(gates0, w_hh0_ref, num_layers > 1)

        # ---- layers l > 0: one bulk input-projection matmul, then recurrence --
        for l in range(1, num_layers):
            w_ih_ref = layer_refs[3 * l + 0]
            w_hh_ref = layer_refs[3 * l + 1]
            b_ref = layer_refs[3 * l + 2]
            h_seq = jnp.concatenate(prev, axis=0)                       # (T*B, H)
            gates = (jnp.dot(h_seq, w_ih_ref[...],
                             preferred_element_type=jnp.float32)
                     + b_ref[...])                                      # (T*B,4H)
            h_top, prev = lstm_layer(gates, w_hh_ref, l < num_layers - 1)

        # ---- dropout == identity at inference; final linear -------------------
        out_ref[...] = (jnp.dot(h_top, w_out_ref[...],
                                preferred_element_type=jnp.float32)
                        + b_out_ref[...])

    return kernel


def lstm_encoded_static_forward(historic, static, params, config):
    """Pallas wrapper.  historic: (B, T, 1) f32, static: (B, 1, S) f32."""
    B, T, _ = historic.shape
    H = config['LSTM_hidden_size']
    L = config['LSTM_num_layers']
    OUT = config['forecast_sequence_length']

    # Time-major flattened historic: row t*B + b == historic[b, t, 0].
    hist_flat = jnp.transpose(historic, (1, 0, 2)).reshape(T * B, 1)
    hist_flat = hist_flat.astype(jnp.float32)
    static2d = static[:, 0, :].astype(jnp.float32)                      # (B, S)

    args = [hist_flat, static2d, params['w_enc']]
    for l in range(L):
        args += [params[f'w_ih_{l}'], params[f'w_hh_{l}'], params[f'b_{l}']]
    args += [params['w_out'], params['b_out']]

    kernel = make_lstm_kernel(L, H, T, B)
    return pl.pallas_call(
        kernel,
        out_shape=jax.ShapeDtypeStruct((B, OUT), jnp.float32),
        in_specs=[pl.BlockSpec(memory_space=pltpu.MemorySpace.VMEM)] * len(args),
        out_specs=pl.BlockSpec(memory_space=pltpu.MemorySpace.VMEM),
    )(*args)


def init_params(key, config, dtype=jnp.float32):
    """Deterministic synthetic parameters (shapes mirror the PyTorch module)."""
    H = config['LSTM_hidden_size']
    L = config['LSTM_num_layers']
    O = config['one_hot_output_size']
    S = config['static_size']
    OUT = config['forecast_sequence_length']
    IN = 1 + O
    scale = 0.1

    keys = jax.random.split(key, 3 + 4 * L)
    params = {}
    # static_encoder: Linear(S -> O, bias=False); stored transposed (S, O)
    params['w_enc'] = scale * jax.random.normal(keys[0], (S, O), dtype)
    ki = 1
    for l in range(L):
        in_l = IN if l == 0 else H
        w_ih = scale * jax.random.normal(keys[ki + 0], (in_l, 4 * H), dtype)
        w_hh = scale * jax.random.normal(keys[ki + 1], (H, 4 * H), dtype)
        b_ih = scale * jax.random.normal(keys[ki + 2], (4 * H,), dtype)
        b_hh = scale * jax.random.normal(keys[ki + 3], (4 * H,), dtype)
        params[f'w_ih_{l}'] = w_ih
        params[f'w_hh_{l}'] = w_hh
        params[f'b_{l}'] = (b_ih + b_hh).reshape(1, 4 * H)
        ki += 4
    # output_layer: Linear(H -> OUT); stored transposed (H, OUT)
    k_out = jax.random.split(keys[-1], 2)
    params['w_out'] = scale * jax.random.normal(k_out[0], (H, OUT), dtype)
    params['b_out'] = scale * jax.random.normal(k_out[1], (1, OUT), dtype)
    return params


def reference_forward(historic, static, params, config):
    """Pure-JAX reference of the PyTorch forward (eval mode)."""
    B, T, _ = historic.shape
    H = config['LSTM_hidden_size']
    L = config['LSTM_num_layers']

    xs = jnp.repeat(static, T, axis=1)                  # (B, T, S)
    enc = xs @ params['w_enc']                          # (B, T, O)
    enc = jax.nn.softmax(enc, axis=2)
    x = jnp.concatenate([historic, enc], axis=-1)       # (B, T, 1+O)

    layer_in = x
    for l in range(L):
        w_ih = params[f'w_ih_{l}']
        w_hh = params[f'w_hh_{l}']
        b = params[f'b_{l}']
        h = jnp.zeros((B, H), jnp.float32)
        c = jnp.zeros((B, H), jnp.float32)
        outs = []
        for t in range(T):
            gates = layer_in[:, t, :] @ w_ih + h @ w_hh + b
            i_g = jax.nn.sigmoid(gates[:, 0 * H:1 * H])
            f_g = jax.nn.sigmoid(gates[:, 1 * H:2 * H])
            g_g = jnp.tanh(gates[:, 2 * H:3 * H])
            o_g = jax.nn.sigmoid(gates[:, 3 * H:4 * H])
            c = f_g * c + i_g * g_g
            h = o_g * jnp.tanh(c)
            outs.append(h)
        layer_in = jnp.stack(outs, axis=1)               # (B, T, H)
    h_last = layer_in[:, -1, :]
    # dropout == identity (eval)
    return h_last @ params['w_out'] + params['b_out']


if __name__ == "__main__":
    config = {
        'LSTM_hidden_size': 32,
        'LSTM_num_layers': 2,
        'forecast_sequence_length': 4,
        'one_hot_output_size': 8,
        'static_size': 6,
        'historic_sequence_length': 8,
        'dropout_rate': 0.1,   # identity at inference
    }
    B = 2
    T = config['historic_sequence_length']
    S = config['static_size']

    key = jax.random.PRNGKey(0)
    k_hist, k_static = jax.random.split(key, 2)
    historic = jax.random.normal(k_hist, (B, T, 1), jnp.float32)
    static = jax.random.normal(k_static, (B, 1, S), jnp.float32)
    params = init_params(jax.random.PRNGKey(42), config)

    out = lstm_encoded_static_forward(historic, static, params, config)
    out = jax.block_until_ready(out)

    ref = reference_forward(historic, static, params, config)
    assert out.shape == (B, config['forecast_sequence_length'])
    assert jnp.allclose(out, ref, atol=1e-2, rtol=1e-2), (
        f"mismatch, max err={float(jnp.max(jnp.abs(out - ref)))}")

    print("KERNEL_OK")
</pallas_src>

<mosaic_0001>
module attributes {stable_mosaic.version = 11 : i64} {
  func.func @kernel(%arg0: memref<16x1xf32, #tpu.memory_space<vmem>>, %arg1: memref<2x6xf32, #tpu.memory_space<vmem>>, %arg2: memref<6x8xf32, #tpu.memory_space<vmem>>, %arg3: memref<9x128xf32, #tpu.memory_space<vmem>>, %arg4: memref<32x128xf32, #tpu.memory_space<vmem>>, %arg5: memref<1x128xf32, #tpu.memory_space<vmem>>, %arg6: memref<32x128xf32, #tpu.memory_space<vmem>>, %arg7: memref<32x128xf32, #tpu.memory_space<vmem>>, %arg8: memref<1x128xf32, #tpu.memory_space<vmem>>, %arg9: memref<32x4xf32, #tpu.memory_space<vmem>>, %arg10: memref<1x4xf32, #tpu.memory_space<vmem>>, %arg11: memref<2x4xf32, #tpu.memory_space<vmem>>) attributes {dimension_semantics = [], scalar_prefetch = 0 : i64, scratch_operands = 0 : i64, tpu.core_type = #tpu.core_type<tc>} {
    %c0 = arith.constant 0 : index
    %c0_0 = arith.constant 0 : index
    %0 = vector.load %arg1[%c0, %c0_0] : memref<2x6xf32, #tpu.memory_space<vmem>>, vector<2x6xf32>
    %c0_1 = arith.constant 0 : index
    %c0_2 = arith.constant 0 : index
    %1 = vector.load %arg2[%c0_1, %c0_2] : memref<6x8xf32, #tpu.memory_space<vmem>>, vector<6x8xf32>
    %cst = arith.constant dense<0.000000e+00> : vector<2x8xf32>
    %2 = tpu.matmul %0, %1, %cst {dimension_numbers = #tpu.dot_dimension_numbers<[1], [0], [0], [1], [0, 0, 1, 1], [], []>} : vector<2x6xf32>, vector<6x8xf32>, vector<2x8xf32> -> vector<2x8xf32>
    %cst_3 = arith.constant dense<0xFF800000> : vector<2xf32>
    %3 = vector.multi_reduction <maximumf>, %2, %cst_3 [1] : vector<2x8xf32> to vector<2xf32>
    %4 = vector.shape_cast %3 : vector<2xf32> to vector<2x1xf32>
    %5 = vector.broadcast %4 : vector<2x1xf32> to vector<2x8xf32>
    %6 = arith.subf %2, %5 : vector<2x8xf32>
    %7 = math.exp %6 : vector<2x8xf32>
    %cst_4 = arith.constant dense<0.000000e+00> : vector<2xf32>
    %8 = vector.multi_reduction <add>, %7, %cst_4 [1] : vector<2x8xf32> to vector<2xf32>
    %9 = vector.shape_cast %8 : vector<2xf32> to vector<2x1xf32>
    %10 = tpu.reciprocal %9 {approx = true} : vector<2x1xf32> -> vector<2x1xf32>
    %11 = vector.broadcast %10 : vector<2x1xf32> to vector<2x8xf32>
    %12 = arith.mulf %7, %11 : vector<2x8xf32>
    %c1 = arith.constant 1 : index
    %c0_5 = arith.constant 0 : index
    %13 = vector.load %arg3[%c1, %c0_5] : memref<9x128xf32, #tpu.memory_space<vmem>>, vector<8x128xf32>
    %cst_6 = arith.constant dense<0.000000e+00> : vector<2x128xf32>
    %14 = tpu.matmul %12, %13, %cst_6 {dimension_numbers = #tpu.dot_dimension_numbers<[1], [0], [0], [1], [0, 0, 1, 1], [], []>} : vector<2x8xf32>, vector<8x128xf32>, vector<2x128xf32> -> vector<2x128xf32>
    %c0_7 = arith.constant 0 : index
    %c0_8 = arith.constant 0 : index
    %15 = vector.load %arg5[%c0_7, %c0_8] : memref<1x128xf32, #tpu.memory_space<vmem>>, vector<1x128xf32>
    %16 = vector.broadcast %15 : vector<1x128xf32> to vector<2x128xf32>
    %17 = arith.addf %14, %16 : vector<2x128xf32>
    %c0_9 = arith.constant 0 : index
    %c0_10 = arith.constant 0 : index
    %18 = vector.load %arg0[%c0_9, %c0_10] : memref<16x1xf32, #tpu.memory_space<vmem>>, vector<16x1xf32>
    %c0_11 = arith.constant 0 : index
    %c0_12 = arith.constant 0 : index
    %19 = vector.load %arg3[%c0_11, %c0_12] : memref<9x128xf32, #tpu.memory_space<vmem>>, vector<1x128xf32>
    %20 = vector.broadcast %18 : vector<16x1xf32> to vector<16x128xf32>
    %21 = vector.broadcast %19 : vector<1x128xf32> to vector<16x128xf32>
    %22 = arith.mulf %20, %21 : vector<16x128xf32>
    %23 = tpu.concatenate %17, %17, %17, %17, %17, %17, %17, %17 in 0 : vector<2x128xf32>, vector<2x128xf32>, vector<2x128xf32>, vector<2x128xf32>, vector<2x128xf32>, vector<2x128xf32>, vector<2x128xf32>, vector<2x128xf32> -> vector<16x128xf32>
    %24 = arith.addf %22, %23 : vector<16x128xf32>
    %c0_13 = arith.constant 0 : index
    %c0_14 = arith.constant 0 : index
    %25 = vector.load %arg4[%c0_13, %c0_14] : memref<32x128xf32, #tpu.memory_space<vmem>>, vector<32x128xf32>
    %cst_15 = arith.constant 0.000000e+00 : f32
    %26 = vector.broadcast %cst_15 : f32 to vector<2x32xf32>
    %cst_16 = arith.constant 0.000000e+00 : f32
    %27 = vector.broadcast %cst_16 : f32 to vector<2x32xf32>
    %28 = vector.extract_strided_slice %24 {offsets = [0, 0], sizes = [2, 128], strides = [1, 1]} : vector<16x128xf32> to vector<2x128xf32>
    %cst_17 = arith.constant dense<0.000000e+00> : vector<2x128xf32>
    %29 = tpu.matmul %26, %25, %cst_17 {dimension_numbers = #tpu.dot_dimension_numbers<[1], [0], [0], [1], [0, 0, 1, 1], [], []>} : vector<2x32xf32>, vector<32x128xf32>, vector<2x128xf32> -> vector<2x128xf32>
    %30 = arith.addf %28, %29 : vector<2x128xf32>
    %31 = arith.negf %30 : vector<2x128xf32>
    %32 = math.exp %31 : vector<2x128xf32>
    %cst_18 = arith.constant 1.000000e+00 : f32
    %33 = vector.broadcast %cst_18 : f32 to vector<2x128xf32>
    %34 = arith.addf %33, %32 : vector<2x128xf32>
    %35 = arith.divf %33, %34 : vector<2x128xf32>
    %36 = vector.extract_strided_slice %35 {offsets = [0, 0], sizes = [2, 32], strides = [1, 1]} : vector<2x128xf32> to vector<2x32xf32>
    %37 = vector.extract_strided_slice %35 {offsets = [0, 32], sizes = [2, 32], strides = [1, 1]} : vector<2x128xf32> to vector<2x32xf32>
    %38 = vector.extract_strided_slice %35 {offsets = [0, 96], sizes = [2, 32], strides = [1, 1]} : vector<2x128xf32> to vector<2x32xf32>
    %39 = vector.extract_strided_slice %30 {offsets = [0, 64], sizes = [2, 32], strides = [1, 1]} : vector<2x128xf32> to vector<2x32xf32>
    %40 = math.tanh %39 : vector<2x32xf32>
    %41 = arith.mulf %37, %27 : vector<2x32xf32>
    %42 = arith.mulf %36, %40 : vector<2x32xf32>
    %43 = arith.addf %41, %42 : vector<2x32xf32>
    %44 = math.tanh %43 : vector<2x32xf32>
    %45 = arith.mulf %38, %44 : vector<2x32xf32>
    %46 = vector.extract_strided_slice %24 {offsets = [2, 0], sizes = [2, 128], strides = [1, 1]} : vector<16x128xf32> to vector<2x128xf32>
    %cst_19 = arith.constant dense<0.000000e+00> : vector<2x128xf32>
    %47 = tpu.matmul %45, %25, %cst_19 {dimension_numbers = #tpu.dot_dimension_numbers<[1], [0], [0], [1], [0, 0, 1, 1], [], []>} : vector<2x32xf32>, vector<32x128xf32>, vector<2x128xf32> -> vector<2x128xf32>
    %48 = arith.addf %46, %47 : vector<2x128xf32>
    %49 = arith.negf %48 : vector<2x128xf32>
    %50 = math.exp %49 : vector<2x128xf32>
    %cst_20 = arith.constant 1.000000e+00 : f32
    %51 = vector.broadcast %cst_20 : f32 to vector<2x128xf32>
    %52 = arith.addf %51, %50 : vector<2x128xf32>
    %53 = arith.divf %51, %52 : vector<2x128xf32>
    %54 = vector.extract_strided_slice %53 {offsets = [0, 0], sizes = [2, 32], strides = [1, 1]} : vector<2x128xf32> to vector<2x32xf32>
    %55 = vector.extract_strided_slice %53 {offsets = [0, 32], sizes = [2, 32], strides = [1, 1]} : vector<2x128xf32> to vector<2x32xf32>
    %56 = vector.extract_strided_slice %53 {offsets = [0, 96], sizes = [2, 32], strides = [1, 1]} : vector<2x128xf32> to vector<2x32xf32>
    %57 = vector.extract_strided_slice %48 {offsets = [0, 64], sizes = [2, 32], strides = [1, 1]} : vector<2x128xf32> to vector<2x32xf32>
    %58 = math.tanh %57 : vector<2x32xf32>
    %59 = arith.mulf %55, %43 : vector<2x32xf32>
    %60 = arith.mulf %54, %58 : vector<2x32xf32>
    %61 = arith.addf %59, %60 : vector<2x32xf32>
    %62 = math.tanh %61 : vector<2x32xf32>
    %63 = arith.mulf %56, %62 : vector<2x32xf32>
    %64 = vector.extract_strided_slice %24 {offsets = [4, 0], sizes = [2, 128], strides = [1, 1]} : vector<16x128xf32> to vector<2x128xf32>
    %cst_21 = arith.constant dense<0.000000e+00> : vector<2x128xf32>
    %65 = tpu.matmul %63, %25, %cst_21 {dimension_numbers = #tpu.dot_dimension_numbers<[1], [0], [0], [1], [0, 0, 1, 1], [], []>} : vector<2x32xf32>, vector<32x128xf32>, vector<2x128xf32> -> vector<2x128xf32>
    %66 = arith.addf %64, %65 : vector<2x128xf32>
    %67 = arith.negf %66 : vector<2x128xf32>
    %68 = math.exp %67 : vector<2x128xf32>
    %cst_22 = arith.constant 1.000000e+00 : f32
    %69 = vector.broadcast %cst_22 : f32 to vector<2x128xf32>
    %70 = arith.addf %69, %68 : vector<2x128xf32>
    %71 = arith.divf %69, %70 : vector<2x128xf32>
    %72 = vector.extract_strided_slice %71 {offsets = [0, 0], sizes = [2, 32], strides = [1, 1]} : vector<2x128xf32> to vector<2x32xf32>
    %73 = vector.extract_strided_slice %71 {offsets = [0, 32], sizes = [2, 32], strides = [1, 1]} : vector<2x128xf32> to vector<2x32xf32>
    %74 = vector.extract_strided_slice %71 {offsets = [0, 96], sizes = [2, 32], strides = [1, 1]} : vector<2x128xf32> to vector<2x32xf32>
    %75 = vector.extract_strided_slice %66 {offsets = [0, 64], sizes = [2, 32], strides = [1, 1]} : vector<2x128xf32> to vector<2x32xf32>
    %76 = math.tanh %75 : vector<2x32xf32>
    %77 = arith.mulf %73, %61 : vector<2x32xf32>
    %78 = arith.mulf %72, %76 : vector<2x32xf32>
    %79 = arith.addf %77, %78 : vector<2x32xf32>
    %80 = math.tanh %79 : vector<2x32xf32>
    %81 = arith.mulf %74, %80 : vector<2x32xf32>
    %82 = vector.extract_strided_slice %24 {offsets = [6, 0], sizes = [2, 128], strides = [1, 1]} : vector<16x128xf32> to vector<2x128xf32>
    %cst_23 = arith.constant dense<0.000000e+00> : vector<2x128xf32>
    %83 = tpu.matmul %81, %25, %cst_23 {dimension_numbers = #tpu.dot_dimension_numbers<[1], [0], [0], [1], [0, 0, 1, 1], [], []>} : vector<2x32xf32>, vector<32x128xf32>, vector<2x128xf32> -> vector<2x128xf32>
    %84 = arith.addf %82, %83 : vector<2x128xf32>
    %85 = arith.negf %84 : vector<2x128xf32>
    %86 = math.exp %85 : vector<2x128xf32>
    %cst_24 = arith.constant 1.000000e+00 : f32
    %87 = vector.broadcast %cst_24 : f32 to vector<2x128xf32>
    %88 = arith.addf %87, %86 : vector<2x128xf32>
    %89 = arith.divf %87, %88 : vector<2x128xf32>
    %90 = vector.extract_strided_slice %89 {offsets = [0, 0], sizes = [2, 32], strides = [1, 1]} : vector<2x128xf32> to vector<2x32xf32>
    %91 = vector.extract_strided_slice %89 {offsets = [0, 32], sizes = [2, 32], strides = [1, 1]} : vector<2x128xf32> to vector<2x32xf32>
    %92 = vector.extract_strided_slice %89 {offsets = [0, 96], sizes = [2, 32], strides = [1, 1]} : vector<2x128xf32> to vector<2x32xf32>
    %93 = vector.extract_strided_slice %84 {offsets = [0, 64], sizes = [2, 32], strides = [1, 1]} : vector<2x128xf32> to vector<2x32xf32>
    %94 = math.tanh %93 : vector<2x32xf32>
    %95 = arith.mulf %91, %79 : vector<2x32xf32>
    %96 = arith.mulf %90, %94 : vector<2x32xf32>
    %97 = arith.addf %95, %96 : vector<2x32xf32>
    %98 = math.tanh %97 : vector<2x32xf32>
    %99 = arith.mulf %92, %98 : vector<2x32xf32>
    %100 = vector.extract_strided_slice %24 {offsets = [8, 0], sizes = [2, 128], strides = [1, 1]} : vector<16x128xf32> to vector<2x128xf32>
    %cst_25 = arith.constant dense<0.000000e+00> : vector<2x128xf32>
    %101 = tpu.matmul %99, %25, %cst_25 {dimension_numbers = #tpu.dot_dimension_numbers<[1], [0], [0], [1], [0, 0, 1, 1], [], []>} : vector<2x32xf32>, vector<32x128xf32>, vector<2x128xf32> -> vector<2x128xf32>
    %102 = arith.addf %100, %101 : vector<2x128xf32>
    %103 = arith.negf %102 : vector<2x128xf32>
    %104 = math.exp %103 : vector<2x128xf32>
    %cst_26 = arith.constant 1.000000e+00 : f32
    %105 = vector.broadcast %cst_26 : f32 to vector<2x128xf32>
    %106 = arith.addf %105, %104 : vector<2x128xf32>
    %107 = arith.divf %105, %106 : vector<2x128xf32>
    %108 = vector.extract_strided_slice %107 {offsets = [0, 0], sizes = [2, 32], strides = [1, 1]} : vector<2x128xf32> to vector<2x32xf32>
    %109 = vector.extract_strided_slice %107 {offsets = [0, 32], sizes = [2, 32], strides = [1, 1]} : vector<2x128xf32> to vector<2x32xf32>
    %110 = vector.extract_strided_slice %107 {offsets = [0, 96], sizes = [2, 32], strides = [1, 1]} : vector<2x128xf32> to vector<2x32xf32>
    %111 = vector.extract_strided_slice %102 {offsets = [0, 64], sizes = [2, 32], strides = [1, 1]} : vector<2x128xf32> to vector<2x32xf32>
    %112 = math.tanh %111 : vector<2x32xf32>
    %113 = arith.mulf %109, %97 : vector<2x32xf32>
    %114 = arith.mulf %108, %112 : vector<2x32xf32>
    %115 = arith.addf %113, %114 : vector<2x32xf32>
    %116 = math.tanh %115 : vector<2x32xf32>
    %117 = arith.mulf %110, %116 : vector<2x32xf32>
    %118 = vector.extract_strided_slice %24 {offsets = [10, 0], sizes = [2, 128], strides = [1, 1]} : vector<16x128xf32> to vector<2x128xf32>
    %cst_27 = arith.constant dense<0.000000e+00> : vector<2x128xf32>
    %119 = tpu.matmul %117, %25, %cst_27 {dimension_numbers = #tpu.dot_dimension_numbers<[1], [0], [0], [1], [0, 0, 1, 1], [], []>} : vector<2x32xf32>, vector<32x128xf32>, vector<2x128xf32> -> vector<2x128xf32>
    %120 = arith.addf %118, %119 : vector<2x128xf32>
    %121 = arith.negf %120 : vector<2x128xf32>
    %122 = math.exp %121 : vector<2x128xf32>
    %cst_28 = arith.constant 1.000000e+00 : f32
    %123 = vector.broadcast %cst_28 : f32 to vector<2x128xf32>
    %124 = arith.addf %123, %122 : vector<2x128xf32>
    %125 = arith.divf %123, %124 : vector<2x128xf32>
    %126 = vector.extract_strided_slice %125 {offsets = [0, 0], sizes = [2, 32], strides = [1, 1]} : vector<2x128xf32> to vector<2x32xf32>
    %127 = vector.extract_strided_slice %125 {offsets = [0, 32], sizes = [2, 32], strides = [1, 1]} : vector<2x128xf32> to vector<2x32xf32>
    %128 = vector.extract_strided_slice %125 {offsets = [0, 96], sizes = [2, 32], strides = [1, 1]} : vector<2x128xf32> to vector<2x32xf32>
    %129 = vector.extract_strided_slice %120 {offsets = [0, 64], sizes = [2, 32], strides = [1, 1]} : vector<2x128xf32> to vector<2x32xf32>
    %130 = math.tanh %129 : vector<2x32xf32>
    %131 = arith.mulf %127, %115 : vector<2x32xf32>
    %132 = arith.mulf %126, %130 : vector<2x32xf32>
    %133 = arith.addf %131, %132 : vector<2x32xf32>
    %134 = math.tanh %133 : vector<2x32xf32>
    %135 = arith.mulf %128, %134 : vector<2x32xf32>
    %136 = vector.extract_strided_slice %24 {offsets = [12, 0], sizes = [2, 128], strides = [1, 1]} : vector<16x128xf32> to vector<2x128xf32>
    %cst_29 = arith.constant dense<0.000000e+00> : vector<2x128xf32>
    %137 = tpu.matmul %135, %25, %cst_29 {dimension_numbers = #tpu.dot_dimension_numbers<[1], [0], [0], [1], [0, 0, 1, 1], [], []>} : vector<2x32xf32>, vector<32x128xf32>, vector<2x128xf32> -> vector<2x128xf32>
    %138 = arith.addf %136, %137 : vector<2x128xf32>
    %139 = arith.negf %138 : vector<2x128xf32>
    %140 = math.exp %139 : vector<2x128xf32>
    %cst_30 = arith.constant 1.000000e+00 : f32
    %141 = vector.broadcast %cst_30 : f32 to vector<2x128xf32>
    %142 = arith.addf %141, %140 : vector<2x128xf32>
    %143 = arith.divf %141, %142 : vector<2x128xf32>
    %144 = vector.extract_strided_slice %143 {offsets = [0, 0], sizes = [2, 32], strides = [1, 1]} : vector<2x128xf32> to vector<2x32xf32>
    %145 = vector.extract_strided_slice %143 {offsets = [0, 32], sizes = [2, 32], strides = [1, 1]} : vector<2x128xf32> to vector<2x32xf32>
    %146 = vector.extract_strided_slice %143 {offsets = [0, 96], sizes = [2, 32], strides = [1, 1]} : vector<2x128xf32> to vector<2x32xf32>
    %147 = vector.extract_strided_slice %138 {offsets = [0, 64], sizes = [2, 32], strides = [1, 1]} : vector<2x128xf32> to vector<2x32xf32>
    %148 = math.tanh %147 : vector<2x32xf32>
    %149 = arith.mulf %145, %133 : vector<2x32xf32>
    %150 = arith.mulf %144, %148 : vector<2x32xf32>
    %151 = arith.addf %149, %150 : vector<2x32xf32>
    %152 = math.tanh %151 : vector<2x32xf32>
    %153 = arith.mulf %146, %152 : vector<2x32xf32>
    %154 = vector.extract_strided_slice %24 {offsets = [14, 0], sizes = [2, 128], strides = [1, 1]} : vector<16x128xf32> to vector<2x128xf32>
    %cst_31 = arith.constant dense<0.000000e+00> : vector<2x128xf32>
    %155 = tpu.matmul %153, %25, %cst_31 {dimension_numbers = #tpu.dot_dimension_numbers<[1], [0], [0], [1], [0, 0, 1, 1], [], []>} : vector<2x32xf32>, vector<32x128xf32>, vector<2x128xf32> -> vector<2x128xf32>
    %156 = arith.addf %154, %155 : vector<2x128xf32>
    %157 = arith.negf %156 : vector<2x128xf32>
    %158 = math.exp %157 : vector<2x128xf32>
    %cst_32 = arith.constant 1.000000e+00 : f32
    %159 = vector.broadcast %cst_32 : f32 to vector<2x128xf32>
    %160 = arith.addf %159, %158 : vector<2x128xf32>
    %161 = arith.divf %159, %160 : vector<2x128xf32>
    %162 = vector.extract_strided_slice %161 {offsets = [0, 0], sizes = [2, 32], strides = [1, 1]} : vector<2x128xf32> to vector<2x32xf32>
    %163 = vector.extract_strided_slice %161 {offsets = [0, 32], sizes = [2, 32], strides = [1, 1]} : vector<2x128xf32> to vector<2x32xf32>
    %164 = vector.extract_strided_slice %161 {offsets = [0, 96], sizes = [2, 32], strides = [1, 1]} : vector<2x128xf32> to vector<2x32xf32>
    %165 = vector.extract_strided_slice %156 {offsets = [0, 64], sizes = [2, 32], strides = [1, 1]} : vector<2x128xf32> to vector<2x32xf32>
    %166 = math.tanh %165 : vector<2x32xf32>
    %167 = arith.mulf %163, %151 : vector<2x32xf32>
    %168 = arith.mulf %162, %166 : vector<2x32xf32>
    %169 = arith.addf %167, %168 : vector<2x32xf32>
    %170 = math.tanh %169 : vector<2x32xf32>
    %171 = arith.mulf %164, %170 : vector<2x32xf32>
    %172 = tpu.concatenate %45, %63, %81, %99, %117, %135, %153, %171 in 0 : vector<2x32xf32>, vector<2x32xf32>, vector<2x32xf32>, vector<2x32xf32>, vector<2x32xf32>, vector<2x32xf32>, vector<2x32xf32>, vector<2x32xf32> -> vector<16x32xf32>
    %c0_33 = arith.constant 0 : index
    %c0_34 = arith.constant 0 : index
    %173 = vector.load %arg6[%c0_33, %c0_34] : memref<32x128xf32, #tpu.memory_space<vmem>>, vector<32x128xf32>
    %cst_35 = arith.constant dense<0.000000e+00> : vector<16x128xf32>
    %174 = tpu.matmul %172, %173, %cst_35 {dimension_numbers = #tpu.dot_dimension_numbers<[1], [0], [0], [1], [0, 0, 1, 1], [], []>} : vector<16x32xf32>, vector<32x128xf32>, vector<16x128xf32> -> vector<16x128xf32>
    %c0_36 = arith.constant 0 : index
    %c0_37 = arith.constant 0 : index
    %175 = vector.load %arg8[%c0_36, %c0_37] : memref<1x128xf32, #tpu.memory_space<vmem>>, vector<1x128xf32>
    %176 = vector.broadcast %175 : vector<1x128xf32> to vector<16x128xf32>
    %177 = arith.addf %174, %176 : vector<16x128xf32>
    %c0_38 = arith.constant 0 : index
    %c0_39 = arith.constant 0 : index
    %178 = vector.load %arg7[%c0_38, %c0_39] : memref<32x128xf32, #tpu.memory_space<vmem>>, vector<32x128xf32>
    %cst_40 = arith.constant 0.000000e+00 : f32
    %179 = vector.broadcast %cst_40 : f32 to vector<2x32xf32>
    %cst_41 = arith.constant 0.000000e+00 : f32
    %180 = vector.broadcast %cst_41 : f32 to vector<2x32xf32>
    %181 = vector.extract_strided_slice %177 {offsets = [0, 0], sizes = [2, 128], strides = [1, 1]} : vector<16x128xf32> to vector<2x128xf32>
    %cst_42 = arith.constant dense<0.000000e+00> : vector<2x128xf32>
    %182 = tpu.matmul %179, %178, %cst_42 {dimension_numbers = #tpu.dot_dimension_numbers<[1], [0], [0], [1], [0, 0, 1, 1], [], []>} : vector<2x32xf32>, vector<32x128xf32>, vector<2x128xf32> -> vector<2x128xf32>
    %183 = arith.addf %181, %182 : vector<2x128xf32>
    %184 = arith.negf %183 : vector<2x128xf32>
    %185 = math.exp %184 : vector<2x128xf32>
    %cst_43 = arith.constant 1.000000e+00 : f32
    %186 = vector.broadcast %cst_43 : f32 to vector<2x128xf32>
    %187 = arith.addf %186, %185 : vector<2x128xf32>
    %188 = arith.divf %186, %187 : vector<2x128xf32>
    %189 = vector.extract_strided_slice %188 {offsets = [0, 0], sizes = [2, 32], strides = [1, 1]} : vector<2x128xf32> to vector<2x32xf32>
    %190 = vector.extract_strided_slice %188 {offsets = [0, 32], sizes = [2, 32], strides = [1, 1]} : vector<2x128xf32> to vector<2x32xf32>
    %191 = vector.extract_strided_slice %188 {offsets = [0, 96], sizes = [2, 32], strides = [1, 1]} : vector<2x128xf32> to vector<2x32xf32>
    %192 = vector.extract_strided_slice %183 {offsets = [0, 64], sizes = [2, 32], strides = [1, 1]} : vector<2x128xf32> to vector<2x32xf32>
    %193 = math.tanh %192 : vector<2x32xf32>
    %194 = arith.mulf %190, %180 : vector<2x32xf32>
    %195 = arith.mulf %189, %193 : vector<2x32xf32>
    %196 = arith.addf %194, %195 : vector<2x32xf32>
    %197 = math.tanh %196 : vector<2x32xf32>
    %198 = arith.mulf %191, %197 : vector<2x32xf32>
    %199 = vector.extract_strided_slice %177 {offsets = [2, 0], sizes = [2, 128], strides = [1, 1]} : vector<16x128xf32> to vector<2x128xf32>
    %cst_44 = arith.constant dense<0.000000e+00> : vector<2x128xf32>
    %200 = tpu.matmul %198, %178, %cst_44 {dimension_numbers = #tpu.dot_dimension_numbers<[1], [0], [0], [1], [0, 0, 1, 1], [], []>} : vector<2x32xf32>, vector<32x128xf32>, vector<2x128xf32> -> vector<2x128xf32>
    %201 = arith.addf %199, %200 : vector<2x128xf32>
    %202 = arith.negf %201 : vector<2x128xf32>
    %203 = math.exp %202 : vector<2x128xf32>
    %cst_45 = arith.constant 1.000000e+00 : f32
    %204 = vector.broadcast %cst_45 : f32 to vector<2x128xf32>
    %205 = arith.addf %204, %203 : vector<2x128xf32>
    %206 = arith.divf %204, %205 : vector<2x128xf32>
    %207 = vector.extract_strided_slice %206 {offsets = [0, 0], sizes = [2, 32], strides = [1, 1]} : vector<2x128xf32> to vector<2x32xf32>
    %208 = vector.extract_strided_slice %206 {offsets = [0, 32], sizes = [2, 32], strides = [1, 1]} : vector<2x128xf32> to vector<2x32xf32>
    %209 = vector.extract_strided_slice %206 {offsets = [0, 96], sizes = [2, 32], strides = [1, 1]} : vector<2x128xf32> to vector<2x32xf32>
    %210 = vector.extract_strided_slice %201 {offsets = [0, 64], sizes = [2, 32], strides = [1, 1]} : vector<2x128xf32> to vector<2x32xf32>
    %211 = math.tanh %210 : vector<2x32xf32>
    %212 = arith.mulf %208, %196 : vector<2x32xf32>
    %213 = arith.mulf %207, %211 : vector<2x32xf32>
    %214 = arith.addf %212, %213 : vector<2x32xf32>
    %215 = math.tanh %214 : vector<2x32xf32>
    %216 = arith.mulf %209, %215 : vector<2x32xf32>
    %217 = vector.extract_strided_slice %177 {offsets = [4, 0], sizes = [2, 128], strides = [1, 1]} : vector<16x128xf32> to vector<2x128xf32>
    %cst_46 = arith.constant dense<0.000000e+00> : vector<2x128xf32>
    %218 = tpu.matmul %216, %178, %cst_46 {dimension_numbers = #tpu.dot_dimension_numbers<[1], [0], [0], [1], [0, 0, 1, 1], [], []>} : vector<2x32xf32>, vector<32x128xf32>, vector<2x128xf32> -> vector<2x128xf32>
    %219 = arith.addf %217, %218 : vector<2x128xf32>
    %220 = arith.negf %219 : vector<2x128xf32>
    %221 = math.exp %220 : vector<2x128xf32>
    %cst_47 = arith.constant 1.000000e+00 : f32
    %222 = vector.broadcast %cst_47 : f32 to vector<2x128xf32>
    %223 = arith.addf %222, %221 : vector<2x128xf32>
    %224 = arith.divf %222, %223 : vector<2x128xf32>
    %225 = vector.extract_strided_slice %224 {offsets = [0, 0], sizes = [2, 32], strides = [1, 1]} : vector<2x128xf32> to vector<2x32xf32>
    %226 = vector.extract_strided_slice %224 {offsets = [0, 32], sizes = [2, 32], strides = [1, 1]} : vector<2x128xf32> to vector<2x32xf32>
    %227 = vector.extract_strided_slice %224 {offsets = [0, 96], sizes = [2, 32], strides = [1, 1]} : vector<2x128xf32> to vector<2x32xf32>
    %228 = vector.extract_strided_slice %219 {offsets = [0, 64], sizes = [2, 32], strides = [1, 1]} : vector<2x128xf32> to vector<2x32xf32>
    %229 = math.tanh %228 : vector<2x32xf32>
    %230 = arith.mulf %226, %214 : vector<2x32xf32>
    %231 = arith.mulf %225, %229 : vector<2x32xf32>
    %232 = arith.addf %230, %231 : vector<2x32xf32>
    %233 = math.tanh %232 : vector<2x32xf32>
    %234 = arith.mulf %227, %233 : vector<2x32xf32>
    %235 = vector.extract_strided_slice %177 {offsets = [6, 0], sizes = [2, 128], strides = [1, 1]} : vector<16x128xf32> to vector<2x128xf32>
    %cst_48 = arith.constant dense<0.000000e+00> : vector<2x128xf32>
    %236 = tpu.matmul %234, %178, %cst_48 {dimension_numbers = #tpu.dot_dimension_numbers<[1], [0], [0], [1], [0, 0, 1, 1], [], []>} : vector<2x32xf32>, vector<32x128xf32>, vector<2x128xf32> -> vector<2x128xf32>
    %237 = arith.addf %235, %236 : vector<2x128xf32>
    %238 = arith.negf %237 : vector<2x128xf32>
    %239 = math.exp %238 : vector<2x128xf32>
    %cst_49 = arith.constant 1.000000e+00 : f32
    %240 = vector.broadcast %cst_49 : f32 to vector<2x128xf32>
    %241 = arith.addf %240, %239 : vector<2x128xf32>
    %242 = arith.divf %240, %241 : vector<2x128xf32>
    %243 = vector.extract_strided_slice %242 {offsets = [0, 0], sizes = [2, 32], strides = [1, 1]} : vector<2x128xf32> to vector<2x32xf32>
    %244 = vector.extract_strided_slice %242 {offsets = [0, 32], sizes = [2, 32], strides = [1, 1]} : vector<2x128xf32> to vector<2x32xf32>
    %245 = vector.extract_strided_slice %242 {offsets = [0, 96], sizes = [2, 32], strides = [1, 1]} : vector<2x128xf32> to vector<2x32xf32>
    %246 = vector.extract_strided_slice %237 {offsets = [0, 64], sizes = [2, 32], strides = [1, 1]} : vector<2x128xf32> to vector<2x32xf32>
    %247 = math.tanh %246 : vector<2x32xf32>
    %248 = arith.mulf %244, %232 : vector<2x32xf32>
    %249 = arith.mulf %243, %247 : vector<2x32xf32>
    %250 = arith.addf %248, %249 : vector<2x32xf32>
    %251 = math.tanh %250 : vector<2x32xf32>
    %252 = arith.mulf %245, %251 : vector<2x32xf32>
    %253 = vector.extract_strided_slice %177 {offsets = [8, 0], sizes = [2, 128], strides = [1, 1]} : vector<16x128xf32> to vector<2x128xf32>
    %cst_50 = arith.constant dense<0.000000e+00> : vector<2x128xf32>
    %254 = tpu.matmul %252, %178, %cst_50 {dimension_numbers = #tpu.dot_dimension_numbers<[1], [0], [0], [1], [0, 0, 1, 1], [], []>} : vector<2x32xf32>, vector<32x128xf32>, vector<2x128xf32> -> vector<2x128xf32>
    %255 = arith.addf %253, %254 : vector<2x128xf32>
    %256 = arith.negf %255 : vector<2x128xf32>
    %257 = math.exp %256 : vector<2x128xf32>
    %cst_51 = arith.constant 1.000000e+00 : f32
    %258 = vector.broadcast %cst_51 : f32 to vector<2x128xf32>
    %259 = arith.addf %258, %257 : vector<2x128xf32>
    %260 = arith.divf %258, %259 : vector<2x128xf32>
    %261 = vector.extract_strided_slice %260 {offsets = [0, 0], sizes = [2, 32], strides = [1, 1]} : vector<2x128xf32> to vector<2x32xf32>
    %262 = vector.extract_strided_slice %260 {offsets = [0, 32], sizes = [2, 32], strides = [1, 1]} : vector<2x128xf32> to vector<2x32xf32>
    %263 = vector.extract_strided_slice %260 {offsets = [0, 96], sizes = [2, 32], strides = [1, 1]} : vector<2x128xf32> to vector<2x32xf32>
    %264 = vector.extract_strided_slice %255 {offsets = [0, 64], sizes = [2, 32], strides = [1, 1]} : vector<2x128xf32> to vector<2x32xf32>
    %265 = math.tanh %264 : vector<2x32xf32>
    %266 = arith.mulf %262, %250 : vector<2x32xf32>
    %267 = arith.mulf %261, %265 : vector<2x32xf32>
    %268 = arith.addf %266, %267 : vector<2x32xf32>
    %269 = math.tanh %268 : vector<2x32xf32>
    %270 = arith.mulf %263, %269 : vector<2x32xf32>
    %271 = vector.extract_strided_slice %177 {offsets = [10, 0], sizes = [2, 128], strides = [1, 1]} : vector<16x128xf32> to vector<2x128xf32>
    %cst_52 = arith.constant dense<0.000000e+00> : vector<2x128xf32>
    %272 = tpu.matmul %270, %178, %cst_52 {dimension_numbers = #tpu.dot_dimension_numbers<[1], [0], [0], [1], [0, 0, 1, 1], [], []>} : vector<2x32xf32>, vector<32x128xf32>, vector<2x128xf32> -> vector<2x128xf32>
    %273 = arith.addf %271, %272 : vector<2x128xf32>
    %274 = arith.negf %273 : vector<2x128xf32>
    %275 = math.exp %274 : vector<2x128xf32>
    %cst_53 = arith.constant 1.000000e+00 : f32
    %276 = vector.broadcast %cst_53 : f32 to vector<2x128xf32>
    %277 = arith.addf %276, %275 : vector<2x128xf32>
    %278 = arith.divf %276, %277 : vector<2x128xf32>
    %279 = vector.extract_strided_slice %278 {offsets = [0, 0], sizes = [2, 32], strides = [1, 1]} : vector<2x128xf32> to vector<2x32xf32>
    %280 = vector.extract_strided_slice %278 {offsets = [0, 32], sizes = [2, 32], strides = [1, 1]} : vector<2x128xf32> to vector<2x32xf32>
    %281 = vector.extract_strided_slice %278 {offsets = [0, 96], sizes = [2, 32], strides = [1, 1]} : vector<2x128xf32> to vector<2x32xf32>
    %282 = vector.extract_strided_slice %273 {offsets = [0, 64], sizes = [2, 32], strides = [1, 1]} : vector<2x128xf32> to vector<2x32xf32>
    %283 = math.tanh %282 : vector<2x32xf32>
    %284 = arith.mulf %280, %268 : vector<2x32xf32>
    %285 = arith.mulf %279, %283 : vector<2x32xf32>
    %286 = arith.addf %284, %285 : vector<2x32xf32>
    %287 = math.tanh %286 : vector<2x32xf32>
    %288 = arith.mulf %281, %287 : vector<2x32xf32>
    %289 = vector.extract_strided_slice %177 {offsets = [12, 0], sizes = [2, 128], strides = [1, 1]} : vector<16x128xf32> to vector<2x128xf32>
    %cst_54 = arith.constant dense<0.000000e+00> : vector<2x128xf32>
    %290 = tpu.matmul %288, %178, %cst_54 {dimension_numbers = #tpu.dot_dimension_numbers<[1], [0], [0], [1], [0, 0, 1, 1], [], []>} : vector<2x32xf32>, vector<32x128xf32>, vector<2x128xf32> -> vector<2x128xf32>
    %291 = arith.addf %289, %290 : vector<2x128xf32>
    %292 = arith.negf %291 : vector<2x128xf32>
    %293 = math.exp %292 : vector<2x128xf32>
    %cst_55 = arith.constant 1.000000e+00 : f32
    %294 = vector.broadcast %cst_55 : f32 to vector<2x128xf32>
    %295 = arith.addf %294, %293 : vector<2x128xf32>
    %296 = arith.divf %294, %295 : vector<2x128xf32>
    %297 = vector.extract_strided_slice %296 {offsets = [0, 0], sizes = [2, 32], strides = [1, 1]} : vector<2x128xf32> to vector<2x32xf32>
    %298 = vector.extract_strided_slice %296 {offsets = [0, 32], sizes = [2, 32], strides = [1, 1]} : vector<2x128xf32> to vector<2x32xf32>
    %299 = vector.extract_strided_slice %296 {offsets = [0, 96], sizes = [2, 32], strides = [1, 1]} : vector<2x128xf32> to vector<2x32xf32>
    %300 = vector.extract_strided_slice %291 {offsets = [0, 64], sizes = [2, 32], strides = [1, 1]} : vector<2x128xf32> to vector<2x32xf32>
    %301 = math.tanh %300 : vector<2x32xf32>
    %302 = arith.mulf %298, %286 : vector<2x32xf32>
    %303 = arith.mulf %297, %301 : vector<2x32xf32>
    %304 = arith.addf %302, %303 : vector<2x32xf32>
    %305 = math.tanh %304 : vector<2x32xf32>
    %306 = arith.mulf %299, %305 : vector<2x32xf32>
    %307 = vector.extract_strided_slice %177 {offsets = [14, 0], sizes = [2, 128], strides = [1, 1]} : vector<16x128xf32> to vector<2x128xf32>
    %cst_56 = arith.constant dense<0.000000e+00> : vector<2x128xf32>
    %308 = tpu.matmul %306, %178, %cst_56 {dimension_numbers = #tpu.dot_dimension_numbers<[1], [0], [0], [1], [0, 0, 1, 1], [], []>} : vector<2x32xf32>, vector<32x128xf32>, vector<2x128xf32> -> vector<2x128xf32>
    %309 = arith.addf %307, %308 : vector<2x128xf32>
    %310 = arith.negf %309 : vector<2x128xf32>
    %311 = math.exp %310 : vector<2x128xf32>
    %cst_57 = arith.constant 1.000000e+00 : f32
    %312 = vector.broadcast %cst_57 : f32 to vector<2x128xf32>
    %313 = arith.addf %312, %311 : vector<2x128xf32>
    %314 = arith.divf %312, %313 : vector<2x128xf32>
    %315 = vector.extract_strided_slice %314 {offsets = [0, 0], sizes = [2, 32], strides = [1, 1]} : vector<2x128xf32> to vector<2x32xf32>
    %316 = vector.extract_strided_slice %314 {offsets = [0, 32], sizes = [2, 32], strides = [1, 1]} : vector<2x128xf32> to vector<2x32xf32>
    %317 = vector.extract_strided_slice %314 {offsets = [0, 96], sizes = [2, 32], strides = [1, 1]} : vector<2x128xf32> to vector<2x32xf32>
    %318 = vector.extract_strided_slice %309 {offsets = [0, 64], sizes = [2, 32], strides = [1, 1]} : vector<2x128xf32> to vector<2x32xf32>
    %319 = math.tanh %318 : vector<2x32xf32>
    %320 = arith.mulf %316, %304 : vector<2x32xf32>
    %321 = arith.mulf %315, %319 : vector<2x32xf32>
    %322 = arith.addf %320, %321 : vector<2x32xf32>
    %323 = math.tanh %322 : vector<2x32xf32>
    %324 = arith.mulf %317, %323 : vector<2x32xf32>
    %c0_58 = arith.constant 0 : index
    %c0_59 = arith.constant 0 : index
    %325 = vector.load %arg9[%c0_58, %c0_59] : memref<32x4xf32, #tpu.memory_space<vmem>>, vector<32x4xf32>
    %cst_60 = arith.constant dense<0.000000e+00> : vector<2x4xf32>
    %326 = tpu.matmul %324, %325, %cst_60 {dimension_numbers = #tpu.dot_dimension_numbers<[1], [0], [0], [1], [0, 0, 1, 1], [], []>} : vector<2x32xf32>, vector<32x4xf32>, vector<2x4xf32> -> vector<2x4xf32>
    %c0_61 = arith.constant 0 : index
    %c0_62 = arith.constant 0 : index
    %327 = vector.load %arg10[%c0_61, %c0_62] : memref<1x4xf32, #tpu.memory_space<vmem>>, vector<1x4xf32>
    %328 = vector.broadcast %327 : vector<1x4xf32> to vector<2x4xf32>
    %329 = arith.addf %326, %328 : vector<2x4xf32>
    %c0_63 = arith.constant 0 : index
    %c0_64 = arith.constant 0 : index
    %330 = vector.load %arg11[%c0_63, %c0_64] : memref<2x4xf32, #tpu.memory_space<vmem>>, vector<2x4xf32>
    tpu.vector_store %arg11[%c0_63, %c0_64], %329 {strides = array<i32>} : memref<2x4xf32, #tpu.memory_space<vmem>>, vector<2x4xf32>,
    return
  }
}

</mosaic_0001>

<llo_original>
// kernel: tpu_custom_call.1
$region0: #{tpu_custom_call.1}
  #allocation0 [shape = 'u32[]', space=smem, size = 0x4, offset = 0x4, fixed_abs, tag = 'smem constant byte address 0x4 - core index']
  #allocation1 [shape = 'u32[144,128]{1,0:T(1,128)}', space=vmem, size = 0x12000, scoped, tag = 'internal scratch']
  %s0 = inlined_call_operand.vmem [shape: f32[16,1], index: 0, kind: input, shape index: {}]
  %s1 = inlined_call_operand.hbm [shape: f32[2,6], index: 1, kind: input, shape index: {}]
  %s2 = inlined_call_operand.hbm [shape: f32[6,8], index: 2, kind: input, shape index: {}]
  %s3 = inlined_call_operand.hbm [shape: f32[9,128], index: 3, kind: input, shape index: {}]
  %s4 = inlined_call_operand.vmem [shape: f32[32,128], index: 4, kind: input, shape index: {}]
  %s5 = inlined_call_operand.vmem [shape: f32[1,128], index: 5, kind: input, shape index: {}]
  %s6 = inlined_call_operand.vmem [shape: f32[32,128], index: 6, kind: input, shape index: {}]
  %s7 = inlined_call_operand.hbm [shape: f32[32,128], index: 7, kind: input, shape index: {}]
  %s8 = inlined_call_operand.vmem [shape: f32[1,128], index: 8, kind: input, shape index: {}]
  %s9 = inlined_call_operand.vmem [shape: f32[32,4], index: 9, kind: input, shape index: {}]
  %s10 = inlined_call_operand.vmem [shape: f32[1,4], index: 10, kind: input, shape index: {}]
  %s11 = inlined_call_operand.hbm [shape: f32[2,4], index: 11, kind: output, shape index: {}]
  %s12 = sld [smem:[#allocation0]]
  $region70: #{tpu_custom_call.1} parent=0
    _
  %s14 = ssub.s32 1, %s12
  %s15 = scalar_select 0, %s14, %s12
  $region1: #{tpu_custom_call.1} parent=0
    #allocation2 [shape = 'u8[1024]{0}', space=vmem, size = 0x400, scoped, tag = 'input window, operand 1, single buffered']
    #allocation3 [shape = 's32[1]{0}', space=sflag, size = 0x4, scoped, tag = 'scoped memory for tpu_custom_call.1']
    #allocation4 [shape = 's32[1]{0}', space=sflag, size = 0x4, scoped, tag = 'scoped memory for tpu_custom_call.1']
    #allocation5 [shape = 'u8[4096]{0}', space=vmem, size = 0x1000, scoped, tag = 'input window, operand 2, single buffered']
    #allocation6 [shape = 's32[1]{0}', space=sflag, size = 0x4, scoped, tag = 'scoped memory for tpu_custom_call.1']
    #allocation7 [shape = 'u8[8192]{0}', space=vmem, size = 0x2000, scoped, tag = 'input window, operand 3, single buffered']
    #allocation8 [shape = 'u8[16384]{0}', space=vmem, size = 0x4000, scoped, tag = 'input window, operand 7, single buffered']
    #allocation9 [shape = 's32[1]{0}', space=sflag, size = 0x4, scoped, tag = 'scoped memory for tpu_custom_call.1']
    #allocation10 [shape = 'u8[1024]{0}', space=vmem, size = 0x400, scoped, tag = 'output window, operand 0, single buffered']
    %16 = vsyncpa [#allocation3], 0
    %17 = vsyncpa [#allocation6], 0
    %18 = vsyncpa [#allocation9], 0
    %19 = vsyncpa [#allocation4], 0
    // Predicated region
    $region2: #{tpu_custom_call.1} parent=1 // pred_check
      _
    $region3: #{tpu_custom_call.1} parent=1 // pred_check_branch
      %21 = sbr.rel (0) target = $region5
    $region4: #{tpu_custom_call.1} parent=1 // pred_region
      _
    $region5: #{tpu_custom_call.1} parent=1 // pred_fallthru
      _
    // Predicated region
    $region6: #{tpu_custom_call.1} parent=1 // pred_check
      _
    $region7: #{tpu_custom_call.1} parent=1 // pred_check_branch
      %23 = sbr.rel (0) target = $region9
    $region8: #{tpu_custom_call.1} parent=1 // pred_region
      %s25 = ssub.s32 32, 32
      %26 = vsyncadd [#allocation3], %s25
      %s28 = sshll.u32 [#allocation2], 4
      %s29 = int_to_ptr.vmem [resolvable:$true] %s28
      %31 = dma.hbm_to_vmem [thread:$0]  %s1, 32, %s29, [#allocation3]
    $region9: #{tpu_custom_call.1} parent=1 // pred_fallthru
      _
    // Predicated region
    $region10: #{tpu_custom_call.1} parent=1 // pred_check
      _
    $region11: #{tpu_custom_call.1} parent=1 // pred_check_branch
      %33 = sbr.rel (0) target = $region13
    $region12: #{tpu_custom_call.1} parent=1 // pred_region
      %s35 = ssub.s32 128, 128
      %36 = vsyncadd [#allocation6], %s35
      %s38 = sshll.u32 [#allocation5], 4
      %s39 = int_to_ptr.vmem [resolvable:$true] %s38
      %41 = dma.hbm_to_vmem [thread:$0]  %s2, 128, %s39, [#allocation6]
    $region13: #{tpu_custom_call.1} parent=1 // pred_fallthru
      _
    // Predicated region
    $region14: #{tpu_custom_call.1} parent=1 // pred_check
      _
    $region15: #{tpu_custom_call.1} parent=1 // pred_check_branch
      %43 = sbr.rel (0) target = $region17
    $region16: #{tpu_custom_call.1} parent=1 // pred_region
      %s45 = ssub.s32 256, 256
      %46 = vsyncadd [#allocation6], %s45
      %s47 = sshll.u32 [#allocation7], 4
      %s48 = int_to_ptr.vmem [resolvable:$true] %s47
      %53 = dma.hbm_to_vmem [thread:$0]  %s3, 256, %s48, [#allocation6], 128, 128, 8
    $region17: #{tpu_custom_call.1} parent=1 // pred_fallthru
      _
    // Predicated region
    $region18: #{tpu_custom_call.1} parent=1 // pred_check
      _
    $region19: #{tpu_custom_call.1} parent=1 // pred_check_branch
      %55 = sbr.rel (0) target = $region21
    $region20: #{tpu_custom_call.1} parent=1 // pred_region
      _
    $region21: #{tpu_custom_call.1} parent=1 // pred_fallthru
      _
    // Predicated region
    $region22: #{tpu_custom_call.1} parent=1 // pred_check
      _
    $region23: #{tpu_custom_call.1} parent=1 // pred_check_branch
      %57 = sbr.rel (0) target = $region25
    $region24: #{tpu_custom_call.1} parent=1 // pred_region
      _
    $region25: #{tpu_custom_call.1} parent=1 // pred_fallthru
      _
    // Predicated region
    $region26: #{tpu_custom_call.1} parent=1 // pred_check
      _
    $region27: #{tpu_custom_call.1} parent=1 // pred_check_branch
      %59 = sbr.rel (0) target = $region29
    $region28: #{tpu_custom_call.1} parent=1 // pred_region
      _
    $region29: #{tpu_custom_call.1} parent=1 // pred_fallthru
      _
    // Predicated region
    $region30: #{tpu_custom_call.1} parent=1 // pred_check
      _
    $region31: #{tpu_custom_call.1} parent=1 // pred_check_branch
      %61 = sbr.rel (0) target = $region33
    $region32: #{tpu_custom_call.1} parent=1 // pred_region
      %s63 = ssub.s32 512, 512
      %64 = vsyncadd [#allocation9], %s63
      %s65 = sshll.u32 [#allocation8], 4
      %s66 = int_to_ptr.vmem [resolvable:$true] %s65
      %71 = dma.hbm_to_vmem [thread:$0]  %s7, 512, %s66, [#allocation9], 128, 128, 8
    $region33: #{tpu_custom_call.1} parent=1 // pred_fallthru
      _
    // Predicated region
    $region34: #{tpu_custom_call.1} parent=1 // pred_check
      _
    $region35: #{tpu_custom_call.1} parent=1 // pred_check_branch
      %73 = sbr.rel (0) target = $region37
    $region36: #{tpu_custom_call.1} parent=1 // pred_region
      _
    $region37: #{tpu_custom_call.1} parent=1 // pred_fallthru
      _
    // Predicated region
    $region38: #{tpu_custom_call.1} parent=1 // pred_check
      _
    $region39: #{tpu_custom_call.1} parent=1 // pred_check_branch
      %75 = sbr.rel (0) target = $region41
    $region40: #{tpu_custom_call.1} parent=1 // pred_region
      _
    $region41: #{tpu_custom_call.1} parent=1 // pred_fallthru
      _
    // Predicated region
    $region42: #{tpu_custom_call.1} parent=1 // pred_check
      _
    $region43: #{tpu_custom_call.1} parent=1 // pred_check_branch
      %77 = sbr.rel (0) target = $region45
    $region44: #{tpu_custom_call.1} parent=1 // pred_region
      _
    $region45: #{tpu_custom_call.1} parent=1 // pred_fallthru
      _
    // Predicated region
    $region46: #{tpu_custom_call.1} parent=1 // pred_check
      _
    $region47: #{tpu_custom_call.1} parent=1 // pred_check_branch
      %79 = sbr.rel (0) target = $region49
    $region48: #{tpu_custom_call.1} parent=1 // pred_region
      %80 = dma.done [#allocation3], 32
    $region49: #{tpu_custom_call.1} parent=1 // pred_fallthru
      _
    // Predicated region
    $region50: #{tpu_custom_call.1} parent=1 // pred_check
      _
    $region51: #{tpu_custom_call.1} parent=1 // pred_check_branch
      %82 = sbr.rel (0) target = $region53
    $region52: #{tpu_custom_call.1} parent=1 // pred_region
      %83 = dma.done [#allocation6], 128
    $region53: #{tpu_custom_call.1} parent=1 // pred_fallthru
      _
    // Predicated region
    $region54: #{tpu_custom_call.1} parent=1 // pred_check
      _
    $region55: #{tpu_custom_call.1} parent=1 // pred_check_branch
      %85 = sbr.rel (0) target = $region57
    $region56: #{tpu_custom_call.1} parent=1 // pred_region
      %86 = dma.done [#allocation6], 256
    $region57: #{tpu_custom_call.1} parent=1 // pred_fallthru
      _
    // Predicated region
    $region58: #{tpu_custom_call.1} parent=1 // pred_check
      _
    $region59: #{tpu_custom_call.1} parent=1 // pred_check_branch
      %88 = sbr.rel (0) target = $region61
    $region60: #{tpu_custom_call.1} parent=1 // pred_region
      %89 = dma.done [#allocation9], 512
    $region61: #{tpu_custom_call.1} parent=1 // pred_fallthru
      _
    %v90 = vld [vmem:[#allocation2] sm:$0x3]
    %v91 = vld [vmem:[#allocation5] sm:$0x3f]
    %vm92 = vcmask 48128
    %v94 = vsel %vm92, %v90, 0
    %vm96 = vcmask 1045504
    %v98 = vsel %vm96, %v91, 0
    %100 = vmatprep.subr.mxu0 0.0
    %101 = vmatpush1.msra.mxu0 %v98
    %102 = vmatprep.subr.mxu0 0.0
    %103 = vmatpush1.msra.mxu0 0.0
    %104 = vmatprep.subr.mxu0 0.0
    %105 = vmatpush1.msra.mxu0 0.0
    %106 = vmatprep.subr.mxu0 0.0
    %107 = vmatpush1.msra.mxu0 0.0
    %108 = vmatprep.subr.mxu0 0.0
    %109 = vmatpush1.msra.mxu0 0.0
    %110 = vmatprep.subr.mxu0 0.0
    %111 = vmatpush1.msra.mxu0 0.0
    %112 = vmatprep.subr.mxu0 0.0
    %113 = vmatpush1.msra.mxu0 0.0
    %114 = vmatprep.subr.mxu0 0.0
    %115 = vmatpush1.msra.mxu0 0.0
    %116 = vmatprep.subr.mxu0 0.0
    %117 = vmatpush1.msra.mxu0 0.0
    %118 = vmatprep.subr.mxu0 0.0
    %119 = vmatpush1.msra.mxu0 0.0
    %120 = vmatprep.subr.mxu0 0.0
    %121 = vmatpush1.msra.mxu0 0.0
    %122 = vmatprep.subr.mxu0 0.0
    %123 = vmatpush1.msra.mxu0 0.0
    %124 = vmatprep.subr.mxu0 0.0
    %125 = vmatpush1.msra.mxu0 0.0
    %126 = vmatprep.subr.mxu0 0.0
    %127 = vmatpush1.msra.mxu0 0.0
    %128 = vmatprep.subr.mxu0 0.0
    %129 = vmatpush1.msra.mxu0 0.0
    %130 = vmatprep.subr.mxu0 0.0
    %131 = vmatpush1.msra.mxu0 0.0
    %132 = vmatprep.subr.mxu0 0.0
    %133 = vmatpush1.msra.mxu0 0.0
    %134 = vmatprep.subr.mxu0 0.0
    %135 = vmatpush1.msra.mxu0 0.0
    %136 = vmatprep.subr.mxu0 0.0
    %137 = vmatpush1.msra.mxu0 0.0
    %138 = vmatprep.subr.mxu0 0.0
    %139 = vmatpush1.msra.mxu0 0.0
    %140 = vmatprep.subr.mxu0 0.0
    %141 = vmatpush1.msra.mxu0 0.0
    %142 = vmatprep.subr.mxu0 0.0
    %143 = vmatpush1.msra.mxu0 0.0
    %144 = vmatprep.subr.mxu0 0.0
    %145 = vmatpush1.msra.mxu0 0.0
    %146 = vmatprep.subr.mxu0 0.0
    %147 = vmatpush1.msra.mxu0 0.0
    %148 = vmatprep.subr.mxu0 0.0
    %149 = vmatpush1.msra.mxu0 0.0
    %150 = vmatprep.subr.mxu0 0.0
    %151 = vmatpush1.msra.mxu0 0.0
    %152 = vmatprep.subr.mxu0 0.0
    %153 = vmatpush1.msra.mxu0 0.0
    %154 = vmatprep.subr.mxu0 0.0
    %155 = vmatpush1.msra.mxu0 0.0
    %156 = vmatprep.subr.mxu0 0.0
    %157 = vmatpush1.msra.mxu0 0.0
    %158 = vmatprep.subr.mxu0 0.0
    %159 = vmatpush1.msra.mxu0 0.0
    %160 = vmatprep.subr.mxu0 0.0
    %161 = vmatpush1.msra.mxu0 0.0
    %162 = vmatprep.subr.mxu0 0.0
    %163 = vmatpush1.msra.mxu0 0.0
    %164 = vmatprep.mubr.f32.mxu0 0.0
    %165 = vmatmul.mubr.f32.gmra.mrb[0].mxu0 %v94
    %v166 = vpop.f32.mrb[0].mxu0
    %v167 = vadd.f32 0.0, %v166
    %v168 = vpop.f32.mrb[0].mxu0
    %169 = vdwg.mxu0
    %vm170 = vcmask 58368
    %v171 = vsel %vm170, %v167, -inf
    %172 = vmax.xlane.f32.xlu0 %v171
    %v173 = vpop.xlane.xlu0 %172
    %v174 = vsub.f32 %v167, %v173
    %v175 = vmul.f32 %v174, 1.442695
    %v176 = vpow.pop %v175
    %v177 = vsel %vm170, %v176, 0.0
    %178 = vadd.xlane.f32.xlu0 %v177
    %v179 = vpop.xlane.xlu0 %178
    %v180 = vrcp.pop %v179
    %v181 = vmul.f32 %v176, %v180
    %v182 = vld [vmem:[#allocation7 + $0x1] sm:$0xff]
    %v183 = vld [vmem:[%s5] sm:$0x1]
    %v185 = vlaneseq
    %v186 = vshrl.u32 %v185, 7
    %v187 = vsub.s32 0, %v186
    %v188 = vrot.slane %v183, %v187
    %vm190 = vcmask 64512
    %v192 = vsel %vm190, %v181, 0
    %194 = vmatprep.subr.mxu0 0.0
    %195 = vmatpush1.msra.mxu0 %v182
    %196 = vmatprep.subr.mxu0 0.0
    %197 = vmatpush1.msra.mxu0 0.0
    %198 = vmatprep.subr.mxu0 0.0
    %199 = vmatpush1.msra.mxu0 0.0
    %200 = vmatprep.subr.mxu0 0.0
    %201 = vmatpush1.msra.mxu0 0.0
    %202 = vmatprep.subr.mxu0 0.0
    %203 = vmatpush1.msra.mxu0 0.0
    %204 = vmatprep.subr.mxu0 0.0
    %205 = vmatpush1.msra.mxu0 0.0
    %206 = vmatprep.subr.mxu0 0.0
    %207 = vmatpush1.msra.mxu0 0.0
    %208 = vmatprep.subr.mxu0 0.0
    %209 = vmatpush1.msra.mxu0 0.0
    %210 = vmatprep.subr.mxu0 0.0
    %211 = vmatpush1.msra.mxu0 0.0
    %212 = vmatprep.subr.mxu0 0.0
    %213 = vmatpush1.msra.mxu0 0.0
    %214 = vmatprep.subr.mxu0 0.0
    %215 = vmatpush1.msra.mxu0 0.0
    %216 = vmatprep.subr.mxu0 0.0
    %217 = vmatpush1.msra.mxu0 0.0
    %218 = vmatprep.subr.mxu0 0.0
    %219 = vmatpush1.msra.mxu0 0.0
    %220 = vmatprep.subr.mxu0 0.0
    %221 = vmatpush1.msra.mxu0 0.0
    %222 = vmatprep.subr.mxu0 0.0
    %223 = vmatpush1.msra.mxu0 0.0
    %224 = vmatprep.subr.mxu0 0.0
    %225 = vmatpush1.msra.mxu0 0.0
    %226 = vmatprep.subr.mxu0 0.0
    %227 = vmatpush1.msra.mxu0 0.0
    %228 = vmatprep.subr.mxu0 0.0
    %229 = vmatpush1.msra.mxu0 0.0
    %230 = vmatprep.subr.mxu0 0.0
    %231 = vmatpush1.msra.mxu0 0.0
    %232 = vmatprep.subr.mxu0 0.0
    %233 = vmatpush1.msra.mxu0 0.0
    %234 = vmatprep.subr.mxu0 0.0
    %235 = vmatpush1.msra.mxu0 0.0
    %236 = vmatprep.subr.mxu0 0.0
    %237 = vmatpush1.msra.mxu0 0.0
    %238 = vmatprep.subr.mxu0 0.0
    %239 = vmatpush1.msra.mxu0 0.0
    %240 = vmatprep.subr.mxu0 0.0
    %241 = vmatpush1.msra.mxu0 0.0
    %242 = vmatprep.subr.mxu0 0.0
    %243 = vmatpush1.msra.mxu0 0.0
    %244 = vmatprep.subr.mxu0 0.0
    %245 = vmatpush1.msra.mxu0 0.0
    %246 = vmatprep.subr.mxu0 0.0
    %247 = vmatpush1.msra.mxu0 0.0
    %248 = vmatprep.subr.mxu0 0.0
    %249 = vmatpush1.msra.mxu0 0.0
    %250 = vmatprep.subr.mxu0 0.0
    %251 = vmatpush1.msra.mxu0 0.0
    %252 = vmatprep.subr.mxu0 0.0
    %253 = vmatpush1.msra.mxu0 0.0
    %254 = vmatprep.subr.mxu0 0.0
    %255 = vmatpush1.msra.mxu0 0.0
    %256 = vmatprep.subr.mxu0 0.0
    %257 = vmatpush1.msra.mxu0 0.0
    %258 = vmatprep.mubr.f32.mxu0 0.0
    %259 = vmatmul.mubr.f32.gmra.mrb[0].mxu0 %v192
    %v260 = vpop.f32.mrb[0].mxu0
    %v261 = vadd.f32 %v188, %v260
    %v262 = vpop.f32.mrb[0].mxu0
    %263 = vdwg.mxu0
    %v264 = vld [vmem:[%s0] sm:$0xff]
    %v265 = vld [vmem:[%s0 + $0x8] sm:$0xff]
    %v266 = vld [vmem:[#allocation7] sm:$0x1]
    %268 = vset.pattern.permute.xlu0 0
    %269 = vperm.xlu0 %268, %v264
    %v270 = vpop.permute.xlu0 %269
    %273 = vset.pattern.permute.xlu0 0
    %274 = vperm.xlu0 %273, %v265
    %v275 = vpop.permute.xlu0 %274
    %v277 = vlaneseq
    %v278 = vshrl.u32 %v277, 7
    %v279 = vsub.s32 0, %v278
    %v280 = vrot.slane %v266, %v279
    %v281 = vmul.f32 %v270, %v280
    %v282 = vmul.f32 %v275, %v280
    %v284 = vrot.slane %v261, 6
    %v286 = vrot.slane %v261, 4
    %v288 = vrot.slane %v261, 2
    %vm290 = vcmask 1041408
    %v291 = vsel %vm290, %v261, %v284
    %vm292 = vcmask 1043456
    %v293 = vsel %vm292, %v291, %v286
    %v294 = vsel %vm96, %v293, %v288
    %v295 = vadd.f32 %v281, %v294
    %v296 = vadd.f32 %v282, %v294
    %v297 = vld [vmem:[%s4] sm:$0xff]
    %v298 = vld [vmem:[%s4 + $0x8] sm:$0xff]
    %v299 = vld [vmem:[%s4 + $0x10] sm:$0xff]
    %v300 = vld [vmem:[%s4 + $0x18] sm:$0xff]
    %vm301 = vcmask 261120
    %v303 = vsel %vm301, 0.0, 0
    %305 = vmatprep.subr.mxu0 0.0
    %306 = vmatpush1.msra.mxu0 %v297
    %307 = vmatprep.subr.mxu0 0.0
    %308 = vmatpush1.msra.mxu0 %v298
    %309 = vmatprep.subr.mxu0 0.0
    %310 = vmatpush1.msra.mxu0 %v299
    %311 = vmatprep.subr.mxu0 0.0
    %312 = vmatpush1.msra.mxu0 %v300
    %313 = vmatprep.subr.mxu0 0.0
    %314 = vmatpush1.msra.mxu0 0.0
    %315 = vmatprep.subr.mxu0 0.0
    %316 = vmatpush1.msra.mxu0 0.0
    %317 = vmatprep.subr.mxu0 0.0
    %318 = vmatpush1.msra.mxu0 0.0
    %319 = vmatprep.subr.mxu0 0.0
    %320 = vmatpush1.msra.mxu0 0.0
    %321 = vmatprep.subr.mxu0 0.0
    %322 = vmatpush1.msra.mxu0 0.0
    %323 = vmatprep.subr.mxu0 0.0
    %324 = vmatpush1.msra.mxu0 0.0
    %325 = vmatprep.subr.mxu0 0.0
    %326 = vmatpush1.msra.mxu0 0.0
    %327 = vmatprep.subr.mxu0 0.0
    %328 = vmatpush1.msra.mxu0 0.0
    %329 = vmatprep.subr.mxu0 0.0
    %330 = vmatpush1.msra.mxu0 0.0
    %331 = vmatprep.subr.mxu0 0.0
    %332 = vmatpush1.msra.mxu0 0.0
    %333 = vmatprep.subr.mxu0 0.0
    %334 = vmatpush1.msra.mxu0 0.0
    %335 = vmatprep.subr.mxu0 0.0
    %336 = vmatpush1.msra.mxu0 0.0
    %337 = vmatprep.subr.mxu0 0.0
    %338 = vmatpush1.msra.mxu0 0.0
    %339 = vmatprep.subr.mxu0 0.0
    %340 = vmatpush1.msra.mxu0 0.0
    %341 = vmatprep.subr.mxu0 0.0
    %342 = vmatpush1.msra.mxu0 0.0
    %343 = vmatprep.subr.mxu0 0.0
    %344 = vmatpush1.msra.mxu0 0.0
    %345 = vmatprep.subr.mxu0 0.0
    %346 = vmatpush1.msra.mxu0 0.0
    %347 = vmatprep.subr.mxu0 0.0
    %348 = vmatpush1.msra.mxu0 0.0
    %349 = vmatprep.subr.mxu0 0.0
    %350 = vmatpush1.msra.mxu0 0.0
    %351 = vmatprep.subr.mxu0 0.0
    %352 = vmatpush1.msra.mxu0 0.0
    %353 = vmatprep.subr.mxu0 0.0
    %354 = vmatpush1.msra.mxu0 0.0
    %355 = vmatprep.subr.mxu0 0.0
    %356 = vmatpush1.msra.mxu0 0.0
    %357 = vmatprep.subr.mxu0 0.0
    %358 = vmatpush1.msra.mxu0 0.0
    %359 = vmatprep.subr.mxu0 0.0
    %360 = vmatpush1.msra.mxu0 0.0
    %361 = vmatprep.subr.mxu0 0.0
    %362 = vmatpush1.msra.mxu0 0.0
    %363 = vmatprep.subr.mxu0 0.0
    %364 = vmatpush1.msra.mxu0 0.0
    %365 = vmatprep.subr.mxu0 0.0
    %366 = vmatpush1.msra.mxu0 0.0
    %367 = vmatprep.subr.mxu0 0.0
    %368 = vmatpush1.msra.mxu0 0.0
    %369 = vmatprep.mubr.f32.mxu0 0.0
    %370 = vmatmul.mubr.f32.gmra.mrb[0].mxu0 %v303
    %v371 = vpop.f32.mrb[0].mxu0
    %v372 = vadd.f32 0.0, %v371
    %v373 = vpop.f32.mrb[0].mxu0
    %374 = vdwg.mxu0
    %v375 = vadd.f32 %v295, %v372
    %v376 = vxor.u32 %v375, 2147483648
    %v377 = vmul.f32 %v376, 1.442695
    %v378 = vpow.pop %v377
    %v379 = vadd.f32 %v378, 1.0
    %v380 = vrcp.pop %v379
    %v381 = vmul.f32 1.0, %v380
    %v382 = vtanh.pop %v375
    %v383 = vmul.f32 %v381, 0.0
    %385 = vrot.lane.b32.xlu0 %v382, 64
    %v386 = vpop.permute.xlu0 %385
    %v388 = vmul.f32 %v381, %v386
    %390 = vrot.lane.b32.xlu0 %v388, 32
    %v391 = vpop.permute.xlu0 %390
    %v393 = vadd.f32 %v383, %v391
    %v394 = vtanh.pop %v393
    %396 = vrot.lane.b32.xlu0 %v394, 64
    %v397 = vpop.permute.xlu0 %396
    %v399 = vmul.f32 %v381, %v397
    %401 = vrot.lane.b32.xlu0 %v399, 32
    %v402 = vpop.permute.xlu0 %401
    %v403 = vsel %vm301, %v402, 0
    %405 = vmatprep.subr.mxu0 0.0
    %406 = vmatpush1.msra.mxu0 %v297
    %407 = vmatprep.subr.mxu0 0.0
    %408 = vmatpush1.msra.mxu0 %v298
    %409 = vmatprep.subr.mxu0 0.0
    %410 = vmatpush1.msra.mxu0 %v299
    %411 = vmatprep.subr.mxu0 0.0
    %412 = vmatpush1.msra.mxu0 %v300
    %413 = vmatprep.subr.mxu0 0.0
    %414 = vmatpush1.msra.mxu0 0.0
    %415 = vmatprep.subr.mxu0 0.0
    %416 = vmatpush1.msra.mxu0 0.0
    %417 = vmatprep.subr.mxu0 0.0
    %418 = vmatpush1.msra.mxu0 0.0
    %419 = vmatprep.subr.mxu0 0.0
    %420 = vmatpush1.msra.mxu0 0.0
    %421 = vmatprep.subr.mxu0 0.0
    %422 = vmatpush1.msra.mxu0 0.0
    %423 = vmatprep.subr.mxu0 0.0
    %424 = vmatpush1.msra.mxu0 0.0
    %425 = vmatprep.subr.mxu0 0.0
    %426 = vmatpush1.msra.mxu0 0.0
    %427 = vmatprep.subr.mxu0 0.0
    %428 = vmatpush1.msra.mxu0 0.0
    %429 = vmatprep.subr.mxu0 0.0
    %430 = vmatpush1.msra.mxu0 0.0
    %431 = vmatprep.subr.mxu0 0.0
    %432 = vmatpush1.msra.mxu0 0.0
    %433 = vmatprep.subr.mxu0 0.0
    %434 = vmatpush1.msra.mxu0 0.0
    %435 = vmatprep.subr.mxu0 0.0
    %436 = vmatpush1.msra.mxu0 0.0
    %437 = vmatprep.subr.mxu0 0.0
    %438 = vmatpush1.msra.mxu0 0.0
    %439 = vmatprep.subr.mxu0 0.0
    %440 = vmatpush1.msra.mxu0 0.0
    %441 = vmatprep.subr.mxu0 0.0
    %442 = vmatpush1.msra.mxu0 0.0
    %443 = vmatprep.subr.mxu0 0.0
    %444 = vmatpush1.msra.mxu0 0.0
    %445 = vmatprep.subr.mxu0 0.0
    %446 = vmatpush1.msra.mxu0 0.0
    %447 = vmatprep.subr.mxu0 0.0
    %448 = vmatpush1.msra.mxu0 0.0
    %449 = vmatprep.subr.mxu0 0.0
    %450 = vmatpush1.msra.mxu0 0.0
    %451 = vmatprep.subr.mxu0 0.0
    %452 = vmatpush1.msra.mxu0 0.0
    %453 = vmatprep.subr.mxu0 0.0
    %454 = vmatpush1.msra.mxu0 0.0
    %455 = vmatprep.subr.mxu0 0.0
    %456 = vmatpush1.msra.mxu0 0.0
    %457 = vmatprep.subr.mxu0 0.0
    %458 = vmatpush1.msra.mxu0 0.0
    %459 = vmatprep.subr.mxu0 0.0
    %460 = vmatpush1.msra.mxu0 0.0
    %461 = vmatprep.subr.mxu0 0.0
    %462 = vmatpush1.msra.mxu0 0.0
    %463 = vmatprep.subr.mxu0 0.0
    %464 = vmatpush1.msra.mxu0 0.0
    %465 = vmatprep.subr.mxu0 0.0
    %466 = vmatpush1.msra.mxu0 0.0
    %467 = vmatprep.subr.mxu0 0.0
    %468 = vmatpush1.msra.mxu0 0.0
    %469 = vmatprep.mubr.f32.mxu0 0.0
    %470 = vmatmul.mubr.f32.gmra.mrb[0].mxu0 %v403
    %v471 = vpop.f32.mrb[0].mxu0
    %v472 = vadd.f32 0.0, %v471
    %v473 = vpop.f32.mrb[0].mxu0
    %474 = vdwg.mxu0
    %v476 = vrot.slane %v472, 6
    %v478 = vadd.f32 %v295, %v476
    %v479 = vxor.u32 %v478, 2147483648
    %v480 = vmul.f32 %v479, 1.442695
    %v481 = vpow.pop %v480
    %v482 = vadd.f32 %v481, 1.0
    %v483 = vrcp.pop %v482
    %v484 = vmul.f32 1.0, %v483
    %v485 = vtanh.pop %v478
    %v487 = vrot.slane %v393, 6
    %v489 = vmul.f32 %v484, %v487
    %491 = vrot.lane.b32.xlu0 %v485, 64
    %v492 = vpop.permute.xlu0 %491
    %v494 = vmul.f32 %v484, %v492
    %496 = vrot.lane.b32.xlu0 %v494, 32
    %v497 = vpop.permute.xlu0 %496
    %v499 = vadd.f32 %v489, %v497
    %v500 = vtanh.pop %v499
    %502 = vrot.lane.b32.xlu0 %v500, 64
    %v503 = vpop.permute.xlu0 %502
    %v505 = vmul.f32 %v484, %v503
    %v507 = vrot.slane %v505, 2
    %508 = vrot.lane.b32.xlu0 %v507, 32
    %v509 = vpop.permute.xlu0 %508
    %v510 = vsel %vm301, %v509, 0
    %512 = vmatprep.subr.mxu0 0.0
    %513 = vmatpush1.msra.mxu0 %v297
    %514 = vmatprep.subr.mxu0 0.0
    %515 = vmatpush1.msra.mxu0 %v298
    %516 = vmatprep.subr.mxu0 0.0
    %517 = vmatpush1.msra.mxu0 %v299
    %518 = vmatprep.subr.mxu0 0.0
    %519 = vmatpush1.msra.mxu0 %v300
    %520 = vmatprep.subr.mxu0 0.0
    %521 = vmatpush1.msra.mxu0 0.0
    %522 = vmatprep.subr.mxu0 0.0
    %523 = vmatpush1.msra.mxu0 0.0
    %524 = vmatprep.subr.mxu0 0.0
    %525 = vmatpush1.msra.mxu0 0.0
    %526 = vmatprep.subr.mxu0 0.0
    %527 = vmatpush1.msra.mxu0 0.0
    %528 = vmatprep.subr.mxu0 0.0
    %529 = vmatpush1.msra.mxu0 0.0
    %530 = vmatprep.subr.mxu0 0.0
    %531 = vmatpush1.msra.mxu0 0.0
    %532 = vmatprep.subr.mxu0 0.0
    %533 = vmatpush1.msra.mxu0 0.0
    %534 = vmatprep.subr.mxu0 0.0
    %535 = vmatpush1.msra.mxu0 0.0
    %536 = vmatprep.subr.mxu0 0.0
    %537 = vmatpush1.msra.mxu0 0.0
    %538 = vmatprep.subr.mxu0 0.0
    %539 = vmatpush1.msra.mxu0 0.0
    %540 = vmatprep.subr.mxu0 0.0
    %541 = vmatpush1.msra.mxu0 0.0
    %542 = vmatprep.subr.mxu0 0.0
    %543 = vmatpush1.msra.mxu0 0.0
    %544 = vmatprep.subr.mxu0 0.0
    %545 = vmatpush1.msra.mxu0 0.0
    %546 = vmatprep.subr.mxu0 0.0
    %547 = vmatpush1.msra.mxu0 0.0
    %548 = vmatprep.subr.mxu0 0.0
    %549 = vmatpush1.msra.mxu0 0.0
    %550 = vmatprep.subr.mxu0 0.0
    %551 = vmatpush1.msra.mxu0 0.0
    %552 = vmatprep.subr.mxu0 0.0
    %553 = vmatpush1.msra.mxu0 0.0
    %554 = vmatprep.subr.mxu0 0.0
    %555 = vmatpush1.msra.mxu0 0.0
    %556 = vmatprep.subr.mxu0 0.0
    %557 = vmatpush1.msra.mxu0 0.0
    %558 = vmatprep.subr.mxu0 0.0
    %559 = vmatpush1.msra.mxu0 0.0
    %560 = vmatprep.subr.mxu0 0.0
    %561 = vmatpush1.msra.mxu0 0.0
    %562 = vmatprep.subr.mxu0 0.0
    %563 = vmatpush1.msra.mxu0 0.0
    %564 = vmatprep.subr.mxu0 0.0
    %565 = vmatpush1.msra.mxu0 0.0
    %566 = vmatprep.subr.mxu0 0.0
    %567 = vmatpush1.msra.mxu0 0.0
    %568 = vmatprep.subr.mxu0 0.0
    %569 = vmatpush1.msra.mxu0 0.0
    %570 = vmatprep.subr.mxu0 0.0
    %571 = vmatpush1.msra.mxu0 0.0
    %572 = vmatprep.subr.mxu0 0.0
    %573 = vmatpush1.msra.mxu0 0.0
    %574 = vmatprep.subr.mxu0 0.0
    %575 = vmatpush1.msra.mxu0 0.0
    %576 = vmatprep.mubr.f32.mxu0 0.0
    %577 = vmatmul.mubr.f32.gmra.mrb[0].mxu0 %v510
    %v578 = vpop.f32.mrb[0].mxu0
    %v579 = vadd.f32 0.0, %v578
    %v580 = vpop.f32.mrb[0].mxu0
    %581 = vdwg.mxu0
    %v583 = vrot.slane %v579, 4
    %v585 = vadd.f32 %v295, %v583
    %v586 = vxor.u32 %v585, 2147483648
    %v587 = vmul.f32 %v586, 1.442695
    %v588 = vpow.pop %v587
    %v589 = vadd.f32 %v588, 1.0
    %v590 = vrcp.pop %v589
    %v591 = vmul.f32 1.0, %v590
    %v592 = vtanh.pop %v585
    %v594 = vrot.slane %v499, 6
    %v596 = vmul.f32 %v591, %v594
    %598 = vrot.lane.b32.xlu0 %v592, 64
    %v599 = vpop.permute.xlu0 %598
    %v601 = vmul.f32 %v591, %v599
    %603 = vrot.lane.b32.xlu0 %v601, 32
    %v604 = vpop.permute.xlu0 %603
    %v606 = vadd.f32 %v596, %v604
    %v607 = vtanh.pop %v606
    %609 = vrot.lane.b32.xlu0 %v607, 64
    %v610 = vpop.permute.xlu0 %609
    %v612 = vmul.f32 %v591, %v610
    %v614 = vrot.slane %v612, 4
    %615 = vrot.lane.b32.xlu0 %v614, 32
    %v616 = vpop.permute.xlu0 %615
    %v617 = vsel %vm301, %v616, 0
    %619 = vmatprep.subr.mxu0 0.0
    %620 = vmatpush1.msra.mxu0 %v297
    %621 = vmatprep.subr.mxu0 0.0
    %622 = vmatpush1.msra.mxu0 %v298
    %623 = vmatprep.subr.mxu0 0.0
    %624 = vmatpush1.msra.mxu0 %v299
    %625 = vmatprep.subr.mxu0 0.0
    %626 = vmatpush1.msra.mxu0 %v300
    %627 = vmatprep.subr.mxu0 0.0
    %628 = vmatpush1.msra.mxu0 0.0
    %629 = vmatprep.subr.mxu0 0.0
    %630 = vmatpush1.msra.mxu0 0.0
    %631 = vmatprep.subr.mxu0 0.0
    %632 = vmatpush1.msra.mxu0 0.0
    %633 = vmatprep.subr.mxu0 0.0
    %634 = vmatpush1.msra.mxu0 0.0
    %635 = vmatprep.subr.mxu0 0.0
    %636 = vmatpush1.msra.mxu0 0.0
    %637 = vmatprep.subr.mxu0 0.0
    %638 = vmatpush1.msra.mxu0 0.0
    %639 = vmatprep.subr.mxu0 0.0
    %640 = vmatpush1.msra.mxu0 0.0
    %641 = vmatprep.subr.mxu0 0.0
    %642 = vmatpush1.msra.mxu0 0.0
    %643 = vmatprep.subr.mxu0 0.0
    %644 = vmatpush1.msra.mxu0 0.0
    %645 = vmatprep.subr.mxu0 0.0
    %646 = vmatpush1.msra.mxu0 0.0
    %647 = vmatprep.subr.mxu0 0.0
    %648 = vmatpush1.msra.mxu0 0.0
    %649 = vmatprep.subr.mxu0 0.0
    %650 = vmatpush1.msra.mxu0 0.0
    %651 = vmatprep.subr.mxu0 0.0
    %652 = vmatpush1.msra.mxu0 0.0
    %653 = vmatprep.subr.mxu0 0.0
    %654 = vmatpush1.msra.mxu0 0.0
    %655 = vmatprep.subr.mxu0 0.0
    %656 = vmatpush1.msra.mxu0 0.0
    %657 = vmatprep.subr.mxu0 0.0
    %658 = vmatpush1.msra.mxu0 0.0
    %659 = vmatprep.subr.mxu0 0.0
    %660 = vmatpush1.msra.mxu0 0.0
    %661 = vmatprep.subr.mxu0 0.0
    %662 = vmatpush1.msra.mxu0 0.0
    %663 = vmatprep.subr.mxu0 0.0
    %664 = vmatpush1.msra.mxu0 0.0
    %665 = vmatprep.subr.mxu0 0.0
    %666 = vmatpush1.msra.mxu0 0.0
    %667 = vmatprep.subr.mxu0 0.0
    %668 = vmatpush1.msra.mxu0 0.0
    %669 = vmatprep.subr.mxu0 0.0
    %670 = vmatpush1.msra.mxu0 0.0
    %671 = vmatprep.subr.mxu0 0.0
    %672 = vmatpush1.msra.mxu0 0.0
    %673 = vmatprep.subr.mxu0 0.0
    %674 = vmatpush1.msra.mxu0 0.0
    %675 = vmatprep.subr.mxu0 0.0
    %676 = vmatpush1.msra.mxu0 0.0
    %677 = vmatprep.subr.mxu0 0.0
    %678 = vmatpush1.msra.mxu0 0.0
    %679 = vmatprep.subr.mxu0 0.0
    %680 = vmatpush1.msra.mxu0 0.0
    %681 = vmatprep.subr.mxu0 0.0
    %682 = vmatpush1.msra.mxu0 0.0
    %683 = vmatprep.mubr.f32.mxu0 0.0
    %684 = vmatmul.mubr.f32.gmra.mrb[0].mxu0 %v617
    %v685 = vpop.f32.mrb[0].mxu0
    %v686 = vadd.f32 0.0, %v685
    %v687 = vpop.f32.mrb[0].mxu0
    %688 = vdwg.mxu0
    %v690 = vrot.slane %v686, 2
    %v692 = vadd.f32 %v295, %v690
    %v693 = vxor.u32 %v692, 2147483648
    %v694 = vmul.f32 %v693, 1.442695
    %v695 = vpow.pop %v694
    %v696 = vadd.f32 %v695, 1.0
    %v697 = vrcp.pop %v696
    %v698 = vmul.f32 1.0, %v697
    %v699 = vtanh.pop %v692
    %v701 = vrot.slane %v606, 6
    %v703 = vmul.f32 %v698, %v701
    %705 = vrot.lane.b32.xlu0 %v699, 64
    %v706 = vpop.permute.xlu0 %705
    %v708 = vmul.f32 %v698, %v706
    %710 = vrot.lane.b32.xlu0 %v708, 32
    %v711 = vpop.permute.xlu0 %710
    %v713 = vadd.f32 %v703, %v711
    %v714 = vtanh.pop %v713
    %716 = vrot.lane.b32.xlu0 %v714, 64
    %v717 = vpop.permute.xlu0 %716
    %v719 = vmul.f32 %v698, %v717
    %v721 = vrot.slane %v719, 6
    %722 = vrot.lane.b32.xlu0 %v721, 32
    %v723 = vpop.permute.xlu0 %722
    %v724 = vsel %vm301, %v723, 0
    %726 = vmatprep.subr.mxu0 0.0
    %727 = vmatpush1.msra.mxu0 %v297
    %728 = vmatprep.subr.mxu0 0.0
    %729 = vmatpush1.msra.mxu0 %v298
    %730 = vmatprep.subr.mxu0 0.0
    %731 = vmatpush1.msra.mxu0 %v299
    %732 = vmatprep.subr.mxu0 0.0
    %733 = vmatpush1.msra.mxu0 %v300
    %734 = vmatprep.subr.mxu0 0.0
    %735 = vmatpush1.msra.mxu0 0.0
    %736 = vmatprep.subr.mxu0 0.0
    %737 = vmatpush1.msra.mxu0 0.0
    %738 = vmatprep.subr.mxu0 0.0
    %739 = vmatpush1.msra.mxu0 0.0
    %740 = vmatprep.subr.mxu0 0.0
    %741 = vmatpush1.msra.mxu0 0.0
    %742 = vmatprep.subr.mxu0 0.0
    %743 = vmatpush1.msra.mxu0 0.0
    %744 = vmatprep.subr.mxu0 0.0
    %745 = vmatpush1.msra.mxu0 0.0
    %746 = vmatprep.subr.mxu0 0.0
    %747 = vmatpush1.msra.mxu0 0.0
    %748 = vmatprep.subr.mxu0 0.0
    %749 = vmatpush1.msra.mxu0 0.0
    %750 = vmatprep.subr.mxu0 0.0
    %751 = vmatpush1.msra.mxu0 0.0
    %752 = vmatprep.subr.mxu0 0.0
    %753 = vmatpush1.msra.mxu0 0.0
    %754 = vmatprep.subr.mxu0 0.0
    %755 = vmatpush1.msra.mxu0 0.0
    %756 = vmatprep.subr.mxu0 0.0
    %757 = vmatpush1.msra.mxu0 0.0
    %758 = vmatprep.subr.mxu0 0.0
    %759 = vmatpush1.msra.mxu0 0.0
    %760 = vmatprep.subr.mxu0 0.0
    %761 = vmatpush1.msra.mxu0 0.0
    %762 = vmatprep.subr.mxu0 0.0
    %763 = vmatpush1.msra.mxu0 0.0
    %764 = vmatprep.subr.mxu0 0.0
    %765 = vmatpush1.msra.mxu0 0.0
    %766 = vmatprep.subr.mxu0 0.0
    %767 = vmatpush1.msra.mxu0 0.0
    %768 = vmatprep.subr.mxu0 0.0
    %769 = vmatpush1.msra.mxu0 0.0
    %770 = vmatprep.subr.mxu0 0.0
    %771 = vmatpush1.msra.mxu0 0.0
    %772 = vmatprep.subr.mxu0 0.0
    %773 = vmatpush1.msra.mxu0 0.0
    %774 = vmatprep.subr.mxu0 0.0
    %775 = vmatpush1.msra.mxu0 0.0
    %776 = vmatprep.subr.mxu0 0.0
    %777 = vmatpush1.msra.mxu0 0.0
    %778 = vmatprep.subr.mxu0 0.0
    %779 = vmatpush1.msra.mxu0 0.0
    %780 = vmatprep.subr.mxu0 0.0
    %781 = vmatpush1.msra.mxu0 0.0
    %782 = vmatprep.subr.mxu0 0.0
    %783 = vmatpush1.msra.mxu0 0.0
    %784 = vmatprep.subr.mxu0 0.0
    %785 = vmatpush1.msra.mxu0 0.0
    %786 = vmatprep.subr.mxu0 0.0
    %787 = vmatpush1.msra.mxu0 0.0
    %788 = vmatprep.subr.mxu0 0.0
    %789 = vmatpush1.msra.mxu0 0.0
    %790 = vmatprep.mubr.f32.mxu0 0.0
    %791 = vmatmul.mubr.f32.gmra.mrb[0].mxu0 %v724
    %v792 = vpop.f32.mrb[0].mxu0
    %v793 = vadd.f32 0.0, %v792
    %v794 = vpop.f32.mrb[0].mxu0
    %795 = vdwg.mxu0
    %v796 = vadd.f32 %v296, %v793
    %v797 = vxor.u32 %v796, 2147483648
    %v798 = vmul.f32 %v797, 1.442695
    %v799 = vpow.pop %v798
    %v800 = vadd.f32 %v799, 1.0
    %v801 = vrcp.pop %v800
    %v802 = vmul.f32 1.0, %v801
    %v803 = vtanh.pop %v796
    %v805 = vrot.slane %v713, 6
    %v807 = vmul.f32 %v802, %v805
    %809 = vrot.lane.b32.xlu0 %v803, 64
    %v810 = vpop.permute.xlu0 %809
    %v812 = vmul.f32 %v802, %v810
    %814 = vrot.lane.b32.xlu0 %v812, 32
    %v815 = vpop.permute.xlu0 %814
    %v817 = vadd.f32 %v807, %v815
    %v818 = vtanh.pop %v817
    %820 = vrot.lane.b32.xlu0 %v818, 64
    %v821 = vpop.permute.xlu0 %820
    %v823 = vmul.f32 %v802, %v821
    %825 = vrot.lane.b32.xlu0 %v823, 32
    %v826 = vpop.permute.xlu0 %825
    %v827 = vsel %vm301, %v826, 0
    %829 = vmatprep.subr.mxu0 0.0
    %830 = vmatpush1.msra.mxu0 %v297
    %831 = vmatprep.subr.mxu0 0.0
    %832 = vmatpush1.msra.mxu0 %v298
    %833 = vmatprep.subr.mxu0 0.0
    %834 = vmatpush1.msra.mxu0 %v299
    %835 = vmatprep.subr.mxu0 0.0
    %836 = vmatpush1.msra.mxu0 %v300
    %837 = vmatprep.subr.mxu0 0.0
    %838 = vmatpush1.msra.mxu0 0.0
    %839 = vmatprep.subr.mxu0 0.0
    %840 = vmatpush1.msra.mxu0 0.0
    %841 = vmatprep.subr.mxu0 0.0
    %842 = vmatpush1.msra.mxu0 0.0
    %843 = vmatprep.subr.mxu0 0.0
    %844 = vmatpush1.msra.mxu0 0.0
    %845 = vmatprep.subr.mxu0 0.0
    %846 = vmatpush1.msra.mxu0 0.0
    %847 = vmatprep.subr.mxu0 0.0
    %848 = vmatpush1.msra.mxu0 0.0
    %849 = vmatprep.subr.mxu0 0.0
    %850 = vmatpush1.msra.mxu0 0.0
    %851 = vmatprep.subr.mxu0 0.0
    %852 = vmatpush1.msra.mxu0 0.0
    %853 = vmatprep.subr.mxu0 0.0
    %854 = vmatpush1.msra.mxu0 0.0
    %855 = vmatprep.subr.mxu0 0.0
    %856 = vmatpush1.msra.mxu0 0.0
    %857 = vmatprep.subr.mxu0 0.0
    %858 = vmatpush1.msra.mxu0 0.0
    %859 = vmatprep.subr.mxu0 0.0
    %860 = vmatpush1.msra.mxu0 0.0
    %861 = vmatprep.subr.mxu0 0.0
    %862 = vmatpush1.msra.mxu0 0.0
    %863 = vmatprep.subr.mxu0 0.0
    %864 = vmatpush1.msra.mxu0 0.0
    %865 = vmatprep.subr.mxu0 0.0
    %866 = vmatpush1.msra.mxu0 0.0
    %867 = vmatprep.subr.mxu0 0.0
    %868 = vmatpush1.msra.mxu0 0.0
    %869 = vmatprep.subr.mxu0 0.0
    %870 = vmatpush1.msra.mxu0 0.0
    %871 = vmatprep.subr.mxu0 0.0
    %872 = vmatpush1.msra.mxu0 0.0
    %873 = vmatprep.subr.mxu0 0.0
    %874 = vmatpush1.msra.mxu0 0.0
    %875 = vmatprep.subr.mxu0 0.0
    %876 = vmatpush1.msra.mxu0 0.0
    %877 = vmatprep.subr.mxu0 0.0
    %878 = vmatpush1.msra.mxu0 0.0
    %879 = vmatprep.subr.mxu0 0.0
    %880 = vmatpush1.msra.mxu0 0.0
    %881 = vmatprep.subr.mxu0 0.0
    %882 = vmatpush1.msra.mxu0 0.0
    %883 = vmatprep.subr.mxu0 0.0
    %884 = vmatpush1.msra.mxu0 0.0
    %885 = vmatprep.subr.mxu0 0.0
    %886 = vmatpush1.msra.mxu0 0.0
    %887 = vmatprep.subr.mxu0 0.0
    %888 = vmatpush1.msra.mxu0 0.0
    %889 = vmatprep.subr.mxu0 0.0
    %890 = vmatpush1.msra.mxu0 0.0
    %891 = vmatprep.subr.mxu0 0.0
    %892 = vmatpush1.msra.mxu0 0.0
    %893 = vmatprep.mubr.f32.mxu0 0.0
    %894 = vmatmul.mubr.f32.gmra.mrb[0].mxu0 %v827
    %v895 = vpop.f32.mrb[0].mxu0
    %v896 = vadd.f32 0.0, %v895
    %v897 = vpop.f32.mrb[0].mxu0
    %898 = vdwg.mxu0
    %v900 = vrot.slane %v896, 6
    %v902 = vadd.f32 %v296, %v900
    %v903 = vxor.u32 %v902, 2147483648
    %v904 = vmul.f32 %v903, 1.442695
    %v905 = vpow.pop %v904
    %v906 = vadd.f32 %v905, 1.0
    %v907 = vrcp.pop %v906
    %v908 = vmul.f32 1.0, %v907
    %v909 = vtanh.pop %v902
    %v911 = vrot.slane %v817, 6
    %v913 = vmul.f32 %v908, %v911
    %915 = vrot.lane.b32.xlu0 %v909, 64
    %v916 = vpop.permute.xlu0 %915
    %v918 = vmul.f32 %v908, %v916
    %920 = vrot.lane.b32.xlu0 %v918, 32
    %v921 = vpop.permute.xlu0 %920
    %v923 = vadd.f32 %v913, %v921
    %v924 = vtanh.pop %v923
    %926 = vrot.lane.b32.xlu0 %v924, 64
    %v927 = vpop.permute.xlu0 %926
    %v929 = vmul.f32 %v908, %v927
    %v931 = vrot.slane %v929, 2
    %932 = vrot.lane.b32.xlu0 %v931, 32
    %v933 = vpop.permute.xlu0 %932
    %v934 = vsel %vm301, %v933, 0
    %936 = vmatprep.subr.mxu0 0.0
    %937 = vmatpush1.msra.mxu0 %v297
    %938 = vmatprep.subr.mxu0 0.0
    %939 = vmatpush1.msra.mxu0 %v298
    %940 = vmatprep.subr.mxu0 0.0
    %941 = vmatpush1.msra.mxu0 %v299
    %942 = vmatprep.subr.mxu0 0.0
    %943 = vmatpush1.msra.mxu0 %v300
    %944 = vmatprep.subr.mxu0 0.0
    %945 = vmatpush1.msra.mxu0 0.0
    %946 = vmatprep.subr.mxu0 0.0
    %947 = vmatpush1.msra.mxu0 0.0
    %948 = vmatprep.subr.mxu0 0.0
    %949 = vmatpush1.msra.mxu0 0.0
    %950 = vmatprep.subr.mxu0 0.0
    %951 = vmatpush1.msra.mxu0 0.0
    %952 = vmatprep.subr.mxu0 0.0
    %953 = vmatpush1.msra.mxu0 0.0
    %954 = vmatprep.subr.mxu0 0.0
    %955 = vmatpush1.msra.mxu0 0.0
    %956 = vmatprep.subr.mxu0 0.0
    %957 = vmatpush1.msra.mxu0 0.0
    %958 = vmatprep.subr.mxu0 0.0
    %959 = vmatpush1.msra.mxu0 0.0
    %960 = vmatprep.subr.mxu0 0.0
    %961 = vmatpush1.msra.mxu0 0.0
    %962 = vmatprep.subr.mxu0 0.0
    %963 = vmatpush1.msra.mxu0 0.0
    %964 = vmatprep.subr.mxu0 0.0
    %965 = vmatpush1.msra.mxu0 0.0
    %966 = vmatprep.subr.mxu0 0.0
    %967 = vmatpush1.msra.mxu0 0.0
    %968 = vmatprep.subr.mxu0 0.0
    %969 = vmatpush1.msra.mxu0 0.0
    %970 = vmatprep.subr.mxu0 0.0
    %971 = vmatpush1.msra.mxu0 0.0
    %972 = vmatprep.subr.mxu0 0.0
    %973 = vmatpush1.msra.mxu0 0.0
    %974 = vmatprep.subr.mxu0 0.0
    %975 = vmatpush1.msra.mxu0 0.0
    %976 = vmatprep.subr.mxu0 0.0
    %977 = vmatpush1.msra.mxu0 0.0
    %978 = vmatprep.subr.mxu0 0.0
    %979 = vmatpush1.msra.mxu0 0.0
    %980 = vmatprep.subr.mxu0 0.0
    %981 = vmatpush1.msra.mxu0 0.0
    %982 = vmatprep.subr.mxu0 0.0
    %983 = vmatpush1.msra.mxu0 0.0
    %984 = vmatprep.subr.mxu0 0.0
    %985 = vmatpush1.msra.mxu0 0.0
    %986 = vmatprep.subr.mxu0 0.0
    %987 = vmatpush1.msra.mxu0 0.0
    %988 = vmatprep.subr.mxu0 0.0
    %989 = vmatpush1.msra.mxu0 0.0
    %990 = vmatprep.subr.mxu0 0.0
    %991 = vmatpush1.msra.mxu0 0.0
    %992 = vmatprep.subr.mxu0 0.0
    %993 = vmatpush1.msra.mxu0 0.0
    %994 = vmatprep.subr.mxu0 0.0
    %995 = vmatpush1.msra.mxu0 0.0
    %996 = vmatprep.subr.mxu0 0.0
    %997 = vmatpush1.msra.mxu0 0.0
    %998 = vmatprep.subr.mxu0 0.0
    %999 = vmatpush1.msra.mxu0 0.0
    %1000 = vmatprep.mubr.f32.mxu0 0.0
    %1001 = vmatmul.mubr.f32.gmra.mrb[0].mxu0 %v934
    %v1002 = vpop.f32.mrb[0].mxu0
    %v1003 = vadd.f32 0.0, %v1002
    %v1004 = vpop.f32.mrb[0].mxu0
    %1005 = vdwg.mxu0
    %v1007 = vrot.slane %v1003, 4
    %v1009 = vadd.f32 %v296, %v1007
    %v1010 = vxor.u32 %v1009, 2147483648
    %v1011 = vmul.f32 %v1010, 1.442695
    %v1012 = vpow.pop %v1011
    %v1013 = vadd.f32 %v1012, 1.0
    %v1014 = vrcp.pop %v1013
    %v1015 = vmul.f32 1.0, %v1014
    %v1016 = vtanh.pop %v1009
    %v1018 = vrot.slane %v923, 6
    %v1020 = vmul.f32 %v1015, %v1018
    %1022 = vrot.lane.b32.xlu0 %v1016, 64
    %v1023 = vpop.permute.xlu0 %1022
    %v1025 = vmul.f32 %v1015, %v1023
    %1027 = vrot.lane.b32.xlu0 %v1025, 32
    %v1028 = vpop.permute.xlu0 %1027
    %v1030 = vadd.f32 %v1020, %v1028
    %v1031 = vtanh.pop %v1030
    %1033 = vrot.lane.b32.xlu0 %v1031, 64
    %v1034 = vpop.permute.xlu0 %1033
    %v1036 = vmul.f32 %v1015, %v1034
    %v1038 = vrot.slane %v1036, 4
    %1039 = vrot.lane.b32.xlu0 %v1038, 32
    %v1040 = vpop.permute.xlu0 %1039
    %v1041 = vsel %vm301, %v1040, 0
    %1043 = vmatprep.subr.mxu0 0.0
    %1044 = vmatpush1.msra.mxu0 %v297
    %1045 = vmatprep.subr.mxu0 0.0
    %1046 = vmatpush1.msra.mxu0 %v298
    %1047 = vmatprep.subr.mxu0 0.0
    %1048 = vmatpush1.msra.mxu0 %v299
    %1049 = vmatprep.subr.mxu0 0.0
    %1050 = vmatpush1.msra.mxu0 %v300
    %1051 = vmatprep.subr.mxu0 0.0
    %1052 = vmatpush1.msra.mxu0 0.0
    %1053 = vmatprep.subr.mxu0 0.0
    %1054 = vmatpush1.msra.mxu0 0.0
    %1055 = vmatprep.subr.mxu0 0.0
    %1056 = vmatpush1.msra.mxu0 0.0
    %1057 = vmatprep.subr.mxu0 0.0
    %1058 = vmatpush1.msra.mxu0 0.0
    %1059 = vmatprep.subr.mxu0 0.0
    %1060 = vmatpush1.msra.mxu0 0.0
    %1061 = vmatprep.subr.mxu0 0.0
    %1062 = vmatpush1.msra.mxu0 0.0
    %1063 = vmatprep.subr.mxu0 0.0
    %1064 = vmatpush1.msra.mxu0 0.0
    %1065 = vmatprep.subr.mxu0 0.0
    %1066 = vmatpush1.msra.mxu0 0.0
    %1067 = vmatprep.subr.mxu0 0.0
    %1068 = vmatpush1.msra.mxu0 0.0
    %1069 = vmatprep.subr.mxu0 0.0
    %1070 = vmatpush1.msra.mxu0 0.0
    %1071 = vmatprep.subr.mxu0 0.0
    %1072 = vmatpush1.msra.mxu0 0.0
    %1073 = vmatprep.subr.mxu0 0.0
    %1074 = vmatpush1.msra.mxu0 0.0
    %1075 = vmatprep.subr.mxu0 0.0
    %1076 = vmatpush1.msra.mxu0 0.0
    %1077 = vmatprep.subr.mxu0 0.0
    %1078 = vmatpush1.msra.mxu0 0.0
    %1079 = vmatprep.subr.mxu0 0.0
    %1080 = vmatpush1.msra.mxu0 0.0
    %1081 = vmatprep.subr.mxu0 0.0
    %1082 = vmatpush1.msra.mxu0 0.0
    %1083 = vmatprep.subr.mxu0 0.0
    %1084 = vmatpush1.msra.mxu0 0.0
    %1085 = vmatprep.subr.mxu0 0.0
    %1086 = vmatpush1.msra.mxu0 0.0
    %1087 = vmatprep.subr.mxu0 0.0
    %1088 = vmatpush1.msra.mxu0 0.0
    %1089 = vmatprep.subr.mxu0 0.0
    %1090 = vmatpush1.msra.mxu0 0.0
    %1091 = vmatprep.subr.mxu0 0.0
    %1092 = vmatpush1.msra.mxu0 0.0
    %1093 = vmatprep.subr.mxu0 0.0
    %1094 = vmatpush1.msra.mxu0 0.0
    %1095 = vmatprep.subr.mxu0 0.0
    %1096 = vmatpush1.msra.mxu0 0.0
    %1097 = vmatprep.subr.mxu0 0.0
    %1098 = vmatpush1.msra.mxu0 0.0
    %1099 = vmatprep.subr.mxu0 0.0
    %1100 = vmatpush1.msra.mxu0 0.0
    %1101 = vmatprep.subr.mxu0 0.0
    %1102 = vmatpush1.msra.mxu0 0.0
    %1103 = vmatprep.subr.mxu0 0.0
    %1104 = vmatpush1.msra.mxu0 0.0
    %1105 = vmatprep.subr.mxu0 0.0
    %1106 = vmatpush1.msra.mxu0 0.0
    %1107 = vmatprep.mubr.f32.mxu0 0.0
    %1108 = vmatmul.mubr.f32.gmra.mrb[0].mxu0 %v1041
    %v1109 = vpop.f32.mrb[0].mxu0
    %v1110 = vadd.f32 0.0, %v1109
    %v1111 = vpop.f32.mrb[0].mxu0
    %1112 = vdwg.mxu0
    %v1114 = vrot.slane %v1110, 2
    %v1116 = vadd.f32 %v296, %v1114
    %v1117 = vxor.u32 %v1116, 2147483648
    %v1118 = vmul.f32 %v1117, 1.442695
    %v1119 = vpow.pop %v1118
    %v1120 = vadd.f32 %v1119, 1.0
    %v1121 = vrcp.pop %v1120
    %v1122 = vmul.f32 1.0, %v1121
    %v1123 = vtanh.pop %v1116
    %v1125 = vrot.slane %v1030, 6
    %v1127 = vmul.f32 %v1122, %v1125
    %1129 = vrot.lane.b32.xlu0 %v1123, 64
    %v1130 = vpop.permute.xlu0 %1129
    %v1132 = vmul.f32 %v1122, %v1130
    %1134 = vrot.lane.b32.xlu0 %v1132, 32
    %v1135 = vpop.permute.xlu0 %1134
    %v1137 = vadd.f32 %v1127, %v1135
    %v1138 = vtanh.pop %v1137
    %1140 = vrot.lane.b32.xlu0 %v1138, 64
    %v1141 = vpop.permute.xlu0 %1140
    %v1143 = vmul.f32 %v1122, %v1141
    %v1144 = vsel %vm290, %v399, %v505
    %v1145 = vsel %vm292, %v1144, %v612
    %v1146 = vsel %vm96, %v1145, %v719
    %v1147 = vsel %vm290, %v823, %v929
    %v1148 = vsel %vm292, %v1147, %v1036
    %v1149 = vsel %vm96, %v1148, %v1143
    %v1150 = vld [vmem:[%s6] sm:$0xff]
    %v1151 = vld [vmem:[%s6 + $0x8] sm:$0xff]
    %v1152 = vld [vmem:[%s6 + $0x10] sm:$0xff]
    %v1153 = vld [vmem:[%s6 + $0x18] sm:$0xff]
    %v1154 = vld [vmem:[%s8] sm:$0x1]
    %v1156 = vlaneseq
    %v1157 = vshrl.u32 %v1156, 7
    %v1158 = vsub.s32 0, %v1157
    %v1159 = vrot.slane %v1154, %v1158
    %1163 = vrot.lane.b32.xlu0 %v1146, 32
    %v1164 = vpop.permute.xlu0 %1163
    %1165 = vrot.lane.b32.xlu0 %v1149, 32
    %v1166 = vpop.permute.xlu0 %1165
    %v1167 = vsel %vm301, %v1164, 0
    %v1169 = vsel %vm301, %v1166, 0
    %1171 = vmatprep.subr.mxu0 0.0
    %1172 = vmatpush1.msra.mxu0 %v1150
    %1173 = vmatprep.subr.mxu0 0.0
    %1174 = vmatpush1.msra.mxu0 %v1151
    %1175 = vmatprep.subr.mxu0 0.0
    %1176 = vmatpush1.msra.mxu0 %v1152
    %1177 = vmatprep.subr.mxu0 0.0
    %1178 = vmatpush1.msra.mxu0 %v1153
    %1179 = vmatprep.subr.mxu0 0.0
    %1180 = vmatpush1.msra.mxu0 0.0
    %1181 = vmatprep.subr.mxu0 0.0
    %1182 = vmatpush1.msra.mxu0 0.0
    %1183 = vmatprep.subr.mxu0 0.0
    %1184 = vmatpush1.msra.mxu0 0.0
    %1185 = vmatprep.subr.mxu0 0.0
    %1186 = vmatpush1.msra.mxu0 0.0
    %1187 = vmatprep.subr.mxu0 0.0
    %1188 = vmatpush1.msra.mxu0 0.0
    %1189 = vmatprep.subr.mxu0 0.0
    %1190 = vmatpush1.msra.mxu0 0.0
    %1191 = vmatprep.subr.mxu0 0.0
    %1192 = vmatpush1.msra.mxu0 0.0
    %1193 = vmatprep.subr.mxu0 0.0
    %1194 = vmatpush1.msra.mxu0 0.0
    %1195 = vmatprep.subr.mxu0 0.0
    %1196 = vmatpush1.msra.mxu0 0.0
    %1197 = vmatprep.subr.mxu0 0.0
    %1198 = vmatpush1.msra.mxu0 0.0
    %1199 = vmatprep.subr.mxu0 0.0
    %1200 = vmatpush1.msra.mxu0 0.0
    %1201 = vmatprep.subr.mxu0 0.0
    %1202 = vmatpush1.msra.mxu0 0.0
    %1203 = vmatprep.subr.mxu0 0.0
    %1204 = vmatpush1.msra.mxu0 0.0
    %1205 = vmatprep.subr.mxu0 0.0
    %1206 = vmatpush1.msra.mxu0 0.0
    %1207 = vmatprep.subr.mxu0 0.0
    %1208 = vmatpush1.msra.mxu0 0.0
    %1209 = vmatprep.subr.mxu0 0.0
    %1210 = vmatpush1.msra.mxu0 0.0
    %1211 = vmatprep.subr.mxu0 0.0
    %1212 = vmatpush1.msra.mxu0 0.0
    %1213 = vmatprep.subr.mxu0 0.0
    %1214 = vmatpush1.msra.mxu0 0.0
    %1215 = vmatprep.subr.mxu0 0.0
    %1216 = vmatpush1.msra.mxu0 0.0
    %1217 = vmatprep.subr.mxu0 0.0
    %1218 = vmatpush1.msra.mxu0 0.0
    %1219 = vmatprep.subr.mxu0 0.0
    %1220 = vmatpush1.msra.mxu0 0.0
    %1221 = vmatprep.subr.mxu0 0.0
    %1222 = vmatpush1.msra.mxu0 0.0
    %1223 = vmatprep.subr.mxu0 0.0
    %1224 = vmatpush1.msra.mxu0 0.0
    %1225 = vmatprep.subr.mxu0 0.0
    %1226 = vmatpush1.msra.mxu0 0.0
    %1227 = vmatprep.subr.mxu0 0.0
    %1228 = vmatpush1.msra.mxu0 0.0
    %1229 = vmatprep.subr.mxu0 0.0
    %1230 = vmatpush1.msra.mxu0 0.0
    %1231 = vmatprep.subr.mxu0 0.0
    %1232 = vmatpush1.msra.mxu0 0.0
    %1233 = vmatprep.subr.mxu0 0.0
    %1234 = vmatpush1.msra.mxu0 0.0
    %1235 = vmatprep.mubr.f32.mxu0 0.0
    %1236 = vmatmul.mubr.f32.gmra.mrb[0].mxu0 %v1167
    %v1237 = vpop.f32.mrb[0].mxu0
    %v1238 = vadd.f32 %v1159, %v1237
    %v1239 = vpop.f32.mrb[0].mxu0
    %1240 = vmatprep.mubr.f32.mxu0 0.0
    %1241 = vmatmul.mubr.f32.gmra.mrb[0].mxu0 %v1169
    %v1242 = vpop.f32.mrb[0].mxu0
    %v1243 = vadd.f32 %v1159, %v1242
    %v1244 = vpop.f32.mrb[0].mxu0
    %1245 = vdwg.mxu0
    %v1246 = vld [vmem:[#allocation8] sm:$0xff]
    %v1247 = vld [vmem:[#allocation8 + $0x8] sm:$0xff]
    %v1248 = vld [vmem:[#allocation8 + $0x10] sm:$0xff]
    %v1249 = vld [vmem:[#allocation8 + $0x18] sm:$0xff]
    %1250 = vmatprep.subr.mxu0 0.0
    %1251 = vmatpush1.msra.mxu0 %v1246
    %1252 = vmatprep.subr.mxu0 0.0
    %1253 = vmatpush1.msra.mxu0 %v1247
    %1254 = vmatprep.subr.mxu0 0.0
    %1255 = vmatpush1.msra.mxu0 %v1248
    %1256 = vmatprep.subr.mxu0 0.0
    %1257 = vmatpush1.msra.mxu0 %v1249
    %1258 = vmatprep.subr.mxu0 0.0
    %1259 = vmatpush1.msra.mxu0 0.0
    %1260 = vmatprep.subr.mxu0 0.0
    %1261 = vmatpush1.msra.mxu0 0.0
    %1262 = vmatprep.subr.mxu0 0.0
    %1263 = vmatpush1.msra.mxu0 0.0
    %1264 = vmatprep.subr.mxu0 0.0
    %1265 = vmatpush1.msra.mxu0 0.0
    %1266 = vmatprep.subr.mxu0 0.0
    %1267 = vmatpush1.msra.mxu0 0.0
    %1268 = vmatprep.subr.mxu0 0.0
    %1269 = vmatpush1.msra.mxu0 0.0
    %1270 = vmatprep.subr.mxu0 0.0
    %1271 = vmatpush1.msra.mxu0 0.0
    %1272 = vmatprep.subr.mxu0 0.0
    %1273 = vmatpush1.msra.mxu0 0.0
    %1274 = vmatprep.subr.mxu0 0.0
    %1275 = vmatpush1.msra.mxu0 0.0
    %1276 = vmatprep.subr.mxu0 0.0
    %1277 = vmatpush1.msra.mxu0 0.0
    %1278 = vmatprep.subr.mxu0 0.0
    %1279 = vmatpush1.msra.mxu0 0.0
    %1280 = vmatprep.subr.mxu0 0.0
    %1281 = vmatpush1.msra.mxu0 0.0
    %1282 = vmatprep.subr.mxu0 0.0
    %1283 = vmatpush1.msra.mxu0 0.0
    %1284 = vmatprep.subr.mxu0 0.0
    %1285 = vmatpush1.msra.mxu0 0.0
    %1286 = vmatprep.subr.mxu0 0.0
    %1287 = vmatpush1.msra.mxu0 0.0
    %1288 = vmatprep.subr.mxu0 0.0
    %1289 = vmatpush1.msra.mxu0 0.0
    %1290 = vmatprep.subr.mxu0 0.0
    %1291 = vmatpush1.msra.mxu0 0.0
    %1292 = vmatprep.subr.mxu0 0.0
    %1293 = vmatpush1.msra.mxu0 0.0
    %1294 = vmatprep.subr.mxu0 0.0
    %1295 = vmatpush1.msra.mxu0 0.0
    %1296 = vmatprep.subr.mxu0 0.0
    %1297 = vmatpush1.msra.mxu0 0.0
    %1298 = vmatprep.subr.mxu0 0.0
    %1299 = vmatpush1.msra.mxu0 0.0
    %1300 = vmatprep.subr.mxu0 0.0
    %1301 = vmatpush1.msra.mxu0 0.0
    %1302 = vmatprep.subr.mxu0 0.0
    %1303 = vmatpush1.msra.mxu0 0.0
    %1304 = vmatprep.subr.mxu0 0.0
    %1305 = vmatpush1.msra.mxu0 0.0
    %1306 = vmatprep.subr.mxu0 0.0
    %1307 = vmatpush1.msra.mxu0 0.0
    %1308 = vmatprep.subr.mxu0 0.0
    %1309 = vmatpush1.msra.mxu0 0.0
    %1310 = vmatprep.subr.mxu0 0.0
    %1311 = vmatpush1.msra.mxu0 0.0
    %1312 = vmatprep.subr.mxu0 0.0
    %1313 = vmatpush1.msra.mxu0 0.0
    %1314 = vmatprep.mubr.f32.mxu0 0.0
    %1315 = vmatmul.mubr.f32.gmra.mrb[0].mxu0 %v303
    %v1316 = vpop.f32.mrb[0].mxu0
    %v1317 = vadd.f32 0.0, %v1316
    %v1318 = vpop.f32.mrb[0].mxu0
    %1319 = vdwg.mxu0
    %v1320 = vadd.f32 %v1238, %v1317
    %v1321 = vxor.u32 %v1320, 2147483648
    %v1322 = vmul.f32 %v1321, 1.442695
    %v1323 = vpow.pop %v1322
    %v1324 = vadd.f32 %v1323, 1.0
    %v1325 = vrcp.pop %v1324
    %v1326 = vmul.f32 1.0, %v1325
    %v1327 = vtanh.pop %v1320
    %v1328 = vmul.f32 %v1326, 0.0
    %1330 = vrot.lane.b32.xlu0 %v1327, 64
    %v1331 = vpop.permute.xlu0 %1330
    %v1333 = vmul.f32 %v1326, %v1331
    %1335 = vrot.lane.b32.xlu0 %v1333, 32
    %v1336 = vpop.permute.xlu0 %1335
    %v1338 = vadd.f32 %v1328, %v1336
    %v1339 = vtanh.pop %v1338
    %1341 = vrot.lane.b32.xlu0 %v1339, 64
    %v1342 = vpop.permute.xlu0 %1341
    %v1344 = vmul.f32 %v1326, %v1342
    %1346 = vrot.lane.b32.xlu0 %v1344, 32
    %v1347 = vpop.permute.xlu0 %1346
    %v1348 = vsel %vm301, %v1347, 0
    %1350 = vmatprep.subr.mxu0 0.0
    %1351 = vmatpush1.msra.mxu0 %v1246
    %1352 = vmatprep.subr.mxu0 0.0
    %1353 = vmatpush1.msra.mxu0 %v1247
    %1354 = vmatprep.subr.mxu0 0.0
    %1355 = vmatpush1.msra.mxu0 %v1248
    %1356 = vmatprep.subr.mxu0 0.0
    %1357 = vmatpush1.msra.mxu0 %v1249
    %1358 = vmatprep.subr.mxu0 0.0
    %1359 = vmatpush1.msra.mxu0 0.0
    %1360 = vmatprep.subr.mxu0 0.0
    %1361 = vmatpush1.msra.mxu0 0.0
    %1362 = vmatprep.subr.mxu0 0.0
    %1363 = vmatpush1.msra.mxu0 0.0
    %1364 = vmatprep.subr.mxu0 0.0
    %1365 = vmatpush1.msra.mxu0 0.0
    %1366 = vmatprep.subr.mxu0 0.0
    %1367 = vmatpush1.msra.mxu0 0.0
    %1368 = vmatprep.subr.mxu0 0.0
    %1369 = vmatpush1.msra.mxu0 0.0
    %1370 = vmatprep.subr.mxu0 0.0
    %1371 = vmatpush1.msra.mxu0 0.0
    %1372 = vmatprep.subr.mxu0 0.0
    %1373 = vmatpush1.msra.mxu0 0.0
    %1374 = vmatprep.subr.mxu0 0.0
    %1375 = vmatpush1.msra.mxu0 0.0
    %1376 = vmatprep.subr.mxu0 0.0
    %1377 = vmatpush1.msra.mxu0 0.0
    %1378 = vmatprep.subr.mxu0 0.0
    %1379 = vmatpush1.msra.mxu0 0.0
    %1380 = vmatprep.subr.mxu0 0.0
    %1381 = vmatpush1.msra.mxu0 0.0
    %1382 = vmatprep.subr.mxu0 0.0
    %1383 = vmatpush1.msra.mxu0 0.0
    %1384 = vmatprep.subr.mxu0 0.0
    %1385 = vmatpush1.msra.mxu0 0.0
    %1386 = vmatprep.subr.mxu0 0.0
    %1387 = vmatpush1.msra.mxu0 0.0
    %1388 = vmatprep.subr.mxu0 0.0
    %1389 = vmatpush1.msra.mxu0 0.0
    %1390 = vmatprep.subr.mxu0 0.0
    %1391 = vmatpush1.msra.mxu0 0.0
    %1392 = vmatprep.subr.mxu0 0.0
    %1393 = vmatpush1.msra.mxu0 0.0
    %1394 = vmatprep.subr.mxu0 0.0
    %1395 = vmatpush1.msra.mxu0 0.0
    %1396 = vmatprep.subr.mxu0 0.0
    %1397 = vmatpush1.msra.mxu0 0.0
    %1398 = vmatprep.subr.mxu0 0.0
    %1399 = vmatpush1.msra.mxu0 0.0
    %1400 = vmatprep.subr.mxu0 0.0
    %1401 = vmatpush1.msra.mxu0 0.0
    %1402 = vmatprep.subr.mxu0 0.0
    %1403 = vmatpush1.msra.mxu0 0.0
    %1404 = vmatprep.subr.mxu0 0.0
    %1405 = vmatpush1.msra.mxu0 0.0
    %1406 = vmatprep.subr.mxu0 0.0
    %1407 = vmatpush1.msra.mxu0 0.0
    %1408 = vmatprep.subr.mxu0 0.0
    %1409 = vmatpush1.msra.mxu0 0.0
    %1410 = vmatprep.subr.mxu0 0.0
    %1411 = vmatpush1.msra.mxu0 0.0
    %1412 = vmatprep.subr.mxu0 0.0
    %1413 = vmatpush1.msra.mxu0 0.0
    %1414 = vmatprep.mubr.f32.mxu0 0.0
    %1415 = vmatmul.mubr.f32.gmra.mrb[0].mxu0 %v1348
    %v1416 = vpop.f32.mrb[0].mxu0
    %v1417 = vadd.f32 0.0, %v1416
    %v1418 = vpop.f32.mrb[0].mxu0
    %1419 = vdwg.mxu0
    %v1421 = vrot.slane %v1417, 6
    %v1423 = vadd.f32 %v1238, %v1421
    %v1424 = vxor.u32 %v1423, 2147483648
    %v1425 = vmul.f32 %v1424, 1.442695
    %v1426 = vpow.pop %v1425
    %v1427 = vadd.f32 %v1426, 1.0
    %v1428 = vrcp.pop %v1427
    %v1429 = vmul.f32 1.0, %v1428
    %v1430 = vtanh.pop %v1423
    %v1432 = vrot.slane %v1338, 6
    %v1434 = vmul.f32 %v1429, %v1432
    %1436 = vrot.lane.b32.xlu0 %v1430, 64
    %v1437 = vpop.permute.xlu0 %1436
    %v1439 = vmul.f32 %v1429, %v1437
    %1441 = vrot.lane.b32.xlu0 %v1439, 32
    %v1442 = vpop.permute.xlu0 %1441
    %v1444 = vadd.f32 %v1434, %v1442
    %v1445 = vtanh.pop %v1444
    %1447 = vrot.lane.b32.xlu0 %v1445, 64
    %v1448 = vpop.permute.xlu0 %1447
    %v1450 = vmul.f32 %v1429, %v1448
    %v1452 = vrot.slane %v1450, 2
    %1453 = vrot.lane.b32.xlu0 %v1452, 32
    %v1454 = vpop.permute.xlu0 %1453
    %v1455 = vsel %vm301, %v1454, 0
    %1457 = vmatprep.subr.mxu0 0.0
    %1458 = vmatpush1.msra.mxu0 %v1246
    %1459 = vmatprep.subr.mxu0 0.0
    %1460 = vmatpush1.msra.mxu0 %v1247
    %1461 = vmatprep.subr.mxu0 0.0
    %1462 = vmatpush1.msra.mxu0 %v1248
    %1463 = vmatprep.subr.mxu0 0.0
    %1464 = vmatpush1.msra.mxu0 %v1249
    %1465 = vmatprep.subr.mxu0 0.0
    %1466 = vmatpush1.msra.mxu0 0.0
    %1467 = vmatprep.subr.mxu0 0.0
    %1468 = vmatpush1.msra.mxu0 0.0
    %1469 = vmatprep.subr.mxu0 0.0
    %1470 = vmatpush1.msra.mxu0 0.0
    %1471 = vmatprep.subr.mxu0 0.0
    %1472 = vmatpush1.msra.mxu0 0.0
    %1473 = vmatprep.subr.mxu0 0.0
    %1474 = vmatpush1.msra.mxu0 0.0
    %1475 = vmatprep.subr.mxu0 0.0
    %1476 = vmatpush1.msra.mxu0 0.0
    %1477 = vmatprep.subr.mxu0 0.0
    %1478 = vmatpush1.msra.mxu0 0.0
    %1479 = vmatprep.subr.mxu0 0.0
    %1480 = vmatpush1.msra.mxu0 0.0
    %1481 = vmatprep.subr.mxu0 0.0
    %1482 = vmatpush1.msra.mxu0 0.0
    %1483 = vmatprep.subr.mxu0 0.0
    %1484 = vmatpush1.msra.mxu0 0.0
    %1485 = vmatprep.subr.mxu0 0.0
    %1486 = vmatpush1.msra.mxu0 0.0
    %1487 = vmatprep.subr.mxu0 0.0
    %1488 = vmatpush1.msra.mxu0 0.0
    %1489 = vmatprep.subr.mxu0 0.0
    %1490 = vmatpush1.msra.mxu0 0.0
    %1491 = vmatprep.subr.mxu0 0.0
    %1492 = vmatpush1.msra.mxu0 0.0
    %1493 = vmatprep.subr.mxu0 0.0
    %1494 = vmatpush1.msra.mxu0 0.0
    %1495 = vmatprep.subr.mxu0 0.0
    %1496 = vmatpush1.msra.mxu0 0.0
    %1497 = vmatprep.subr.mxu0 0.0
    %1498 = vmatpush1.msra.mxu0 0.0
    %1499 = vmatprep.subr.mxu0 0.0
    %1500 = vmatpush1.msra.mxu0 0.0
    %1501 = vmatprep.subr.mxu0 0.0
    %1502 = vmatpush1.msra.mxu0 0.0
    %1503 = vmatprep.subr.mxu0 0.0
    %1504 = vmatpush1.msra.mxu0 0.0
    %1505 = vmatprep.subr.mxu0 0.0
    %1506 = vmatpush1.msra.mxu0 0.0
    %1507 = vmatprep.subr.mxu0 0.0
    %1508 = vmatpush1.msra.mxu0 0.0
    %1509 = vmatprep.subr.mxu0 0.0
    %1510 = vmatpush1.msra.mxu0 0.0
    %1511 = vmatprep.subr.mxu0 0.0
    %1512 = vmatpush1.msra.mxu0 0.0
    %1513 = vmatprep.subr.mxu0 0.0
    %1514 = vmatpush1.msra.mxu0 0.0
    %1515 = vmatprep.subr.mxu0 0.0
    %1516 = vmatpush1.msra.mxu0 0.0
    %1517 = vmatprep.subr.mxu0 0.0
    %1518 = vmatpush1.msra.mxu0 0.0
    %1519 = vmatprep.subr.mxu0 0.0
    %1520 = vmatpush1.msra.mxu0 0.0
    %1521 = vmatprep.mubr.f32.mxu0 0.0
    %1522 = vmatmul.mubr.f32.gmra.mrb[0].mxu0 %v1455
    %v1523 = vpop.f32.mrb[0].mxu0
    %v1524 = vadd.f32 0.0, %v1523
    %v1525 = vpop.f32.mrb[0].mxu0
    %1526 = vdwg.mxu0
    %v1528 = vrot.slane %v1524, 4
    %v1530 = vadd.f32 %v1238, %v1528
    %v1531 = vxor.u32 %v1530, 2147483648
    %v1532 = vmul.f32 %v1531, 1.442695
    %v1533 = vpow.pop %v1532
    %v1534 = vadd.f32 %v1533, 1.0
    %v1535 = vrcp.pop %v1534
    %v1536 = vmul.f32 1.0, %v1535
    %v1537 = vtanh.pop %v1530
    %v1539 = vrot.slane %v1444, 6
    %v1541 = vmul.f32 %v1536, %v1539
    %1543 = vrot.lane.b32.xlu0 %v1537, 64
    %v1544 = vpop.permute.xlu0 %1543
    %v1546 = vmul.f32 %v1536, %v1544
    %1548 = vrot.lane.b32.xlu0 %v1546, 32
    %v1549 = vpop.permute.xlu0 %1548
    %v1551 = vadd.f32 %v1541, %v1549
    %v1552 = vtanh.pop %v1551
    %1554 = vrot.lane.b32.xlu0 %v1552, 64
    %v1555 = vpop.permute.xlu0 %1554
    %v1557 = vmul.f32 %v1536, %v1555
    %v1559 = vrot.slane %v1557, 4
    %1560 = vrot.lane.b32.xlu0 %v1559, 32
    %v1561 = vpop.permute.xlu0 %1560
    %v1562 = vsel %vm301, %v1561, 0
    %1564 = vmatprep.subr.mxu0 0.0
    %1565 = vmatpush1.msra.mxu0 %v1246
    %1566 = vmatprep.subr.mxu0 0.0
    %1567 = vmatpush1.msra.mxu0 %v1247
    %1568 = vmatprep.subr.mxu0 0.0
    %1569 = vmatpush1.msra.mxu0 %v1248
    %1570 = vmatprep.subr.mxu0 0.0
    %1571 = vmatpush1.msra.mxu0 %v1249
    %1572 = vmatprep.subr.mxu0 0.0
    %1573 = vmatpush1.msra.mxu0 0.0
    %1574 = vmatprep.subr.mxu0 0.0
    %1575 = vmatpush1.msra.mxu0 0.0
    %1576 = vmatprep.subr.mxu0 0.0
    %1577 = vmatpush1.msra.mxu0 0.0
    %1578 = vmatprep.subr.mxu0 0.0
    %1579 = vmatpush1.msra.mxu0 0.0
    %1580 = vmatprep.subr.mxu0 0.0
    %1581 = vmatpush1.msra.mxu0 0.0
    %1582 = vmatprep.subr.mxu0 0.0
    %1583 = vmatpush1.msra.mxu0 0.0
    %1584 = vmatprep.subr.mxu0 0.0
    %1585 = vmatpush1.msra.mxu0 0.0
    %1586 = vmatprep.subr.mxu0 0.0
    %1587 = vmatpush1.msra.mxu0 0.0
    %1588 = vmatprep.subr.mxu0 0.0
    %1589 = vmatpush1.msra.mxu0 0.0
    %1590 = vmatprep.subr.mxu0 0.0
    %1591 = vmatpush1.msra.mxu0 0.0
    %1592 = vmatprep.subr.mxu0 0.0
    %1593 = vmatpush1.msra.mxu0 0.0
    %1594 = vmatprep.subr.mxu0 0.0
    %1595 = vmatpush1.msra.mxu0 0.0
    %1596 = vmatprep.subr.mxu0 0.0
    %1597 = vmatpush1.msra.mxu0 0.0
    %1598 = vmatprep.subr.mxu0 0.0
    %1599 = vmatpush1.msra.mxu0 0.0
    %1600 = vmatprep.subr.mxu0 0.0
    %1601 = vmatpush1.msra.mxu0 0.0
    %1602 = vmatprep.subr.mxu0 0.0
    %1603 = vmatpush1.msra.mxu0 0.0
    %1604 = vmatprep.subr.mxu0 0.0
    %1605 = vmatpush1.msra.mxu0 0.0
    %1606 = vmatprep.subr.mxu0 0.0
    %1607 = vmatpush1.msra.mxu0 0.0
    %1608 = vmatprep.subr.mxu0 0.0
    %1609 = vmatpush1.msra.mxu0 0.0
    %1610 = vmatprep.subr.mxu0 0.0
    %1611 = vmatpush1.msra.mxu0 0.0
    %1612 = vmatprep.subr.mxu0 0.0
    %1613 = vmatpush1.msra.mxu0 0.0
    %1614 = vmatprep.subr.mxu0 0.0
    %1615 = vmatpush1.msra.mxu0 0.0
    %1616 = vmatprep.subr.mxu0 0.0
    %1617 = vmatpush1.msra.mxu0 0.0
    %1618 = vmatprep.subr.mxu0 0.0
    %1619 = vmatpush1.msra.mxu0 0.0
    %1620 = vmatprep.subr.mxu0 0.0
    %1621 = vmatpush1.msra.mxu0 0.0
    %1622 = vmatprep.subr.mxu0 0.0
    %1623 = vmatpush1.msra.mxu0 0.0
    %1624 = vmatprep.subr.mxu0 0.0
    %1625 = vmatpush1.msra.mxu0 0.0
    %1626 = vmatprep.subr.mxu0 0.0
    %1627 = vmatpush1.msra.mxu0 0.0
    %1628 = vmatprep.mubr.f32.mxu0 0.0
    %1629 = vmatmul.mubr.f32.gmra.mrb[0].mxu0 %v1562
    %v1630 = vpop.f32.mrb[0].mxu0
    %v1631 = vadd.f32 0.0, %v1630
    %v1632 = vpop.f32.mrb[0].mxu0
    %1633 = vdwg.mxu0
    %v1635 = vrot.slane %v1631, 2
    %v1637 = vadd.f32 %v1238, %v1635
    %v1638 = vxor.u32 %v1637, 2147483648
    %v1639 = vmul.f32 %v1638, 1.442695
    %v1640 = vpow.pop %v1639
    %v1641 = vadd.f32 %v1640, 1.0
    %v1642 = vrcp.pop %v1641
    %v1643 = vmul.f32 1.0, %v1642
    %v1644 = vtanh.pop %v1637
    %v1646 = vrot.slane %v1551, 6
    %v1648 = vmul.f32 %v1643, %v1646
    %1650 = vrot.lane.b32.xlu0 %v1644, 64
    %v1651 = vpop.permute.xlu0 %1650
    %v1653 = vmul.f32 %v1643, %v1651
    %1655 = vrot.lane.b32.xlu0 %v1653, 32
    %v1656 = vpop.permute.xlu0 %1655
    %v1658 = vadd.f32 %v1648, %v1656
    %v1659 = vtanh.pop %v1658
    %1661 = vrot.lane.b32.xlu0 %v1659, 64
    %v1662 = vpop.permute.xlu0 %1661
    %v1664 = vmul.f32 %v1643, %v1662
    %v1666 = vrot.slane %v1664, 6
    %1667 = vrot.lane.b32.xlu0 %v1666, 32
    %v1668 = vpop.permute.xlu0 %1667
    %v1669 = vsel %vm301, %v1668, 0
    %1671 = vmatprep.subr.mxu0 0.0
    %1672 = vmatpush1.msra.mxu0 %v1246
    %1673 = vmatprep.subr.mxu0 0.0
    %1674 = vmatpush1.msra.mxu0 %v1247
    %1675 = vmatprep.subr.mxu0 0.0
    %1676 = vmatpush1.msra.mxu0 %v1248
    %1677 = vmatprep.subr.mxu0 0.0
    %1678 = vmatpush1.msra.mxu0 %v1249
    %1679 = vmatprep.subr.mxu0 0.0
    %1680 = vmatpush1.msra.mxu0 0.0
    %1681 = vmatprep.subr.mxu0 0.0
    %1682 = vmatpush1.msra.mxu0 0.0
    %1683 = vmatprep.subr.mxu0 0.0
    %1684 = vmatpush1.msra.mxu0 0.0
    %1685 = vmatprep.subr.mxu0 0.0
    %1686 = vmatpush1.msra.mxu0 0.0
    %1687 = vmatprep.subr.mxu0 0.0
    %1688 = vmatpush1.msra.mxu0 0.0
    %1689 = vmatprep.subr.mxu0 0.0
    %1690 = vmatpush1.msra.mxu0 0.0
    %1691 = vmatprep.subr.mxu0 0.0
    %1692 = vmatpush1.msra.mxu0 0.0
    %1693 = vmatprep.subr.mxu0 0.0
    %1694 = vmatpush1.msra.mxu0 0.0
    %1695 = vmatprep.subr.mxu0 0.0
    %1696 = vmatpush1.msra.mxu0 0.0
    %1697 = vmatprep.subr.mxu0 0.0
    %1698 = vmatpush1.msra.mxu0 0.0
    %1699 = vmatprep.subr.mxu0 0.0
    %1700 = vmatpush1.msra.mxu0 0.0
    %1701 = vmatprep.subr.mxu0 0.0
    %1702 = vmatpush1.msra.mxu0 0.0
    %1703 = vmatprep.subr.mxu0 0.0
    %1704 = vmatpush1.msra.mxu0 0.0
    %1705 = vmatprep.subr.mxu0 0.0
    %1706 = vmatpush1.msra.mxu0 0.0
    %1707 = vmatprep.subr.mxu0 0.0
    %1708 = vmatpush1.msra.mxu0 0.0
    %1709 = vmatprep.subr.mxu0 0.0
    %1710 = vmatpush1.msra.mxu0 0.0
    %1711 = vmatprep.subr.mxu0 0.0
    %1712 = vmatpush1.msra.mxu0 0.0
    %1713 = vmatprep.subr.mxu0 0.0
    %1714 = vmatpush1.msra.mxu0 0.0
    %1715 = vmatprep.subr.mxu0 0.0
    %1716 = vmatpush1.msra.mxu0 0.0
    %1717 = vmatprep.subr.mxu0 0.0
    %1718 = vmatpush1.msra.mxu0 0.0
    %1719 = vmatprep.subr.mxu0 0.0
    %1720 = vmatpush1.msra.mxu0 0.0
    %1721 = vmatprep.subr.mxu0 0.0
    %1722 = vmatpush1.msra.mxu0 0.0
    %1723 = vmatprep.subr.mxu0 0.0
    %1724 = vmatpush1.msra.mxu0 0.0
    %1725 = vmatprep.subr.mxu0 0.0
    %1726 = vmatpush1.msra.mxu0 0.0
    %1727 = vmatprep.subr.mxu0 0.0
    %1728 = vmatpush1.msra.mxu0 0.0
    %1729 = vmatprep.subr.mxu0 0.0
    %1730 = vmatpush1.msra.mxu0 0.0
    %1731 = vmatprep.subr.mxu0 0.0
    %1732 = vmatpush1.msra.mxu0 0.0
    %1733 = vmatprep.subr.mxu0 0.0
    %1734 = vmatpush1.msra.mxu0 0.0
    %1735 = vmatprep.mubr.f32.mxu0 0.0
    %1736 = vmatmul.mubr.f32.gmra.mrb[0].mxu0 %v1669
    %v1737 = vpop.f32.mrb[0].mxu0
    %v1738 = vadd.f32 0.0, %v1737
    %v1739 = vpop.f32.mrb[0].mxu0
    %1740 = vdwg.mxu0
    %v1741 = vadd.f32 %v1243, %v1738
    %v1742 = vxor.u32 %v1741, 2147483648
    %v1743 = vmul.f32 %v1742, 1.442695
    %v1744 = vpow.pop %v1743
    %v1745 = vadd.f32 %v1744, 1.0
    %v1746 = vrcp.pop %v1745
    %v1747 = vmul.f32 1.0, %v1746
    %v1748 = vtanh.pop %v1741
    %v1750 = vrot.slane %v1658, 6
    %v1752 = vmul.f32 %v1747, %v1750
    %1754 = vrot.lane.b32.xlu0 %v1748, 64
    %v1755 = vpop.permute.xlu0 %1754
    %v1757 = vmul.f32 %v1747, %v1755
    %1759 = vrot.lane.b32.xlu0 %v1757, 32
    %v1760 = vpop.permute.xlu0 %1759
    %v1762 = vadd.f32 %v1752, %v1760
    %v1763 = vtanh.pop %v1762
    %1765 = vrot.lane.b32.xlu0 %v1763, 64
    %v1766 = vpop.permute.xlu0 %1765
    %v1768 = vmul.f32 %v1747, %v1766
    %1770 = vrot.lane.b32.xlu0 %v1768, 32
    %v1771 = vpop.permute.xlu0 %1770
    %v1772 = vsel %vm301, %v1771, 0
    %1774 = vmatprep.subr.mxu0 0.0
    %1775 = vmatpush1.msra.mxu0 %v1246
    %1776 = vmatprep.subr.mxu0 0.0
    %1777 = vmatpush1.msra.mxu0 %v1247
    %1778 = vmatprep.subr.mxu0 0.0
    %1779 = vmatpush1.msra.mxu0 %v1248
    %1780 = vmatprep.subr.mxu0 0.0
    %1781 = vmatpush1.msra.mxu0 %v1249
    %1782 = vmatprep.subr.mxu0 0.0
    %1783 = vmatpush1.msra.mxu0 0.0
    %1784 = vmatprep.subr.mxu0 0.0
    %1785 = vmatpush1.msra.mxu0 0.0
    %1786 = vmatprep.subr.mxu0 0.0
    %1787 = vmatpush1.msra.mxu0 0.0
    %1788 = vmatprep.subr.mxu0 0.0
    %1789 = vmatpush1.msra.mxu0 0.0
    %1790 = vmatprep.subr.mxu0 0.0
    %1791 = vmatpush1.msra.mxu0 0.0
    %1792 = vmatprep.subr.mxu0 0.0
    %1793 = vmatpush1.msra.mxu0 0.0
    %1794 = vmatprep.subr.mxu0 0.0
    %1795 = vmatpush1.msra.mxu0 0.0
    %1796 = vmatprep.subr.mxu0 0.0
    %1797 = vmatpush1.msra.mxu0 0.0
    %1798 = vmatprep.subr.mxu0 0.0
    %1799 = vmatpush1.msra.mxu0 0.0
    %1800 = vmatprep.subr.mxu0 0.0
    %1801 = vmatpush1.msra.mxu0 0.0
    %1802 = vmatprep.subr.mxu0 0.0
    %1803 = vmatpush1.msra.mxu0 0.0
    %1804 = vmatprep.subr.mxu0 0.0
    %1805 = vmatpush1.msra.mxu0 0.0
    %1806 = vmatprep.subr.mxu0 0.0
    %1807 = vmatpush1.msra.mxu0 0.0
    %1808 = vmatprep.subr.mxu0 0.0
    %1809 = vmatpush1.msra.mxu0 0.0
    %1810 = vmatprep.subr.mxu0 0.0
    %1811 = vmatpush1.msra.mxu0 0.0
    %1812 = vmatprep.subr.mxu0 0.0
    %1813 = vmatpush1.msra.mxu0 0.0
    %1814 = vmatprep.subr.mxu0 0.0
    %1815 = vmatpush1.msra.mxu0 0.0
    %1816 = vmatprep.subr.mxu0 0.0
    %1817 = vmatpush1.msra.mxu0 0.0
    %1818 = vmatprep.subr.mxu0 0.0
    %1819 = vmatpush1.msra.mxu0 0.0
    %1820 = vmatprep.subr.mxu0 0.0
    %1821 = vmatpush1.msra.mxu0 0.0
    %1822 = vmatprep.subr.mxu0 0.0
    %1823 = vmatpush1.msra.mxu0 0.0
    %1824 = vmatprep.subr.mxu0 0.0
    %1825 = vmatpush1.msra.mxu0 0.0
    %1826 = vmatprep.subr.mxu0 0.0
    %1827 = vmatpush1.msra.mxu0 0.0
    %1828 = vmatprep.subr.mxu0 0.0
    %1829 = vmatpush1.msra.mxu0 0.0
    %1830 = vmatprep.subr.mxu0 0.0
    %1831 = vmatpush1.msra.mxu0 0.0
    %1832 = vmatprep.subr.mxu0 0.0
    %1833 = vmatpush1.msra.mxu0 0.0
    %1834 = vmatprep.subr.mxu0 0.0
    %1835 = vmatpush1.msra.mxu0 0.0
    %1836 = vmatprep.subr.mxu0 0.0
    %1837 = vmatpush1.msra.mxu0 0.0
    %1838 = vmatprep.mubr.f32.mxu0 0.0
    %1839 = vmatmul.mubr.f32.gmra.mrb[0].mxu0 %v1772
    %v1840 = vpop.f32.mrb[0].mxu0
    %v1841 = vadd.f32 0.0, %v1840
    %v1842 = vpop.f32.mrb[0].mxu0
    %1843 = vdwg.mxu0
    %v1845 = vrot.slane %v1841, 6
    %v1847 = vadd.f32 %v1243, %v1845
    %v1848 = vxor.u32 %v1847, 2147483648
    %v1849 = vmul.f32 %v1848, 1.442695
    %v1850 = vpow.pop %v1849
    %v1851 = vadd.f32 %v1850, 1.0
    %v1852 = vrcp.pop %v1851
    %v1853 = vmul.f32 1.0, %v1852
    %v1854 = vtanh.pop %v1847
    %v1856 = vrot.slane %v1762, 6
    %v1858 = vmul.f32 %v1853, %v1856
    %1860 = vrot.lane.b32.xlu0 %v1854, 64
    %v1861 = vpop.permute.xlu0 %1860
    %v1863 = vmul.f32 %v1853, %v1861
    %1865 = vrot.lane.b32.xlu0 %v1863, 32
    %v1866 = vpop.permute.xlu0 %1865
    %v1868 = vadd.f32 %v1858, %v1866
    %v1869 = vtanh.pop %v1868
    %1871 = vrot.lane.b32.xlu0 %v1869, 64
    %v1872 = vpop.permute.xlu0 %1871
    %v1874 = vmul.f32 %v1853, %v1872
    %v1876 = vrot.slane %v1874, 2
    %1877 = vrot.lane.b32.xlu0 %v1876, 32
    %v1878 = vpop.permute.xlu0 %1877
    %v1879 = vsel %vm301, %v1878, 0
    %1881 = vmatprep.subr.mxu0 0.0
    %1882 = vmatpush1.msra.mxu0 %v1246
    %1883 = vmatprep.subr.mxu0 0.0
    %1884 = vmatpush1.msra.mxu0 %v1247
    %1885 = vmatprep.subr.mxu0 0.0
    %1886 = vmatpush1.msra.mxu0 %v1248
    %1887 = vmatprep.subr.mxu0 0.0
    %1888 = vmatpush1.msra.mxu0 %v1249
    %1889 = vmatprep.subr.mxu0 0.0
    %1890 = vmatpush1.msra.mxu0 0.0
    %1891 = vmatprep.subr.mxu0 0.0
    %1892 = vmatpush1.msra.mxu0 0.0
    %1893 = vmatprep.subr.mxu0 0.0
    %1894 = vmatpush1.msra.mxu0 0.0
    %1895 = vmatprep.subr.mxu0 0.0
    %1896 = vmatpush1.msra.mxu0 0.0
    %1897 = vmatprep.subr.mxu0 0.0
    %1898 = vmatpush1.msra.mxu0 0.0
    %1899 = vmatprep.subr.mxu0 0.0
    %1900 = vmatpush1.msra.mxu0 0.0
    %1901 = vmatprep.subr.mxu0 0.0
    %1902 = vmatpush1.msra.mxu0 0.0
    %1903 = vmatprep.subr.mxu0 0.0
    %1904 = vmatpush1.msra.mxu0 0.0
    %1905 = vmatprep.subr.mxu0 0.0
    %1906 = vmatpush1.msra.mxu0 0.0
    %1907 = vmatprep.subr.mxu0 0.0
    %1908 = vmatpush1.msra.mxu0 0.0
    %1909 = vmatprep.subr.mxu0 0.0
    %1910 = vmatpush1.msra.mxu0 0.0
    %1911 = vmatprep.subr.mxu0 0.0
    %1912 = vmatpush1.msra.mxu0 0.0
    %1913 = vmatprep.subr.mxu0 0.0
    %1914 = vmatpush1.msra.mxu0 0.0
    %1915 = vmatprep.subr.mxu0 0.0
    %1916 = vmatpush1.msra.mxu0 0.0
    %1917 = vmatprep.subr.mxu0 0.0
    %1918 = vmatpush1.msra.mxu0 0.0
    %1919 = vmatprep.subr.mxu0 0.0
    %1920 = vmatpush1.msra.mxu0 0.0
    %1921 = vmatprep.subr.mxu0 0.0
    %1922 = vmatpush1.msra.mxu0 0.0
    %1923 = vmatprep.subr.mxu0 0.0
    %1924 = vmatpush1.msra.mxu0 0.0
    %1925 = vmatprep.subr.mxu0 0.0
    %1926 = vmatpush1.msra.mxu0 0.0
    %1927 = vmatprep.subr.mxu0 0.0
    %1928 = vmatpush1.msra.mxu0 0.0
    %1929 = vmatprep.subr.mxu0 0.0
    %1930 = vmatpush1.msra.mxu0 0.0
    %1931 = vmatprep.subr.mxu0 0.0
    %1932 = vmatpush1.msra.mxu0 0.0
    %1933 = vmatprep.subr.mxu0 0.0
    %1934 = vmatpush1.msra.mxu0 0.0
    %1935 = vmatprep.subr.mxu0 0.0
    %1936 = vmatpush1.msra.mxu0 0.0
    %1937 = vmatprep.subr.mxu0 0.0
    %1938 = vmatpush1.msra.mxu0 0.0
    %1939 = vmatprep.subr.mxu0 0.0
    %1940 = vmatpush1.msra.mxu0 0.0
    %1941 = vmatprep.subr.mxu0 0.0
    %1942 = vmatpush1.msra.mxu0 0.0
    %1943 = vmatprep.subr.mxu0 0.0
    %1944 = vmatpush1.msra.mxu0 0.0
    %1945 = vmatprep.mubr.f32.mxu0 0.0
    %1946 = vmatmul.mubr.f32.gmra.mrb[0].mxu0 %v1879
    %v1947 = vpop.f32.mrb[0].mxu0
    %v1948 = vadd.f32 0.0, %v1947
    %v1949 = vpop.f32.mrb[0].mxu0
    %1950 = vdwg.mxu0
    %v1952 = vrot.slane %v1948, 4
    %v1954 = vadd.f32 %v1243, %v1952
    %v1955 = vxor.u32 %v1954, 2147483648
    %v1956 = vmul.f32 %v1955, 1.442695
    %v1957 = vpow.pop %v1956
    %v1958 = vadd.f32 %v1957, 1.0
    %v1959 = vrcp.pop %v1958
    %v1960 = vmul.f32 1.0, %v1959
    %v1961 = vtanh.pop %v1954
    %v1963 = vrot.slane %v1868, 6
    %v1965 = vmul.f32 %v1960, %v1963
    %1967 = vrot.lane.b32.xlu0 %v1961, 64
    %v1968 = vpop.permute.xlu0 %1967
    %v1970 = vmul.f32 %v1960, %v1968
    %1972 = vrot.lane.b32.xlu0 %v1970, 32
    %v1973 = vpop.permute.xlu0 %1972
    %v1975 = vadd.f32 %v1965, %v1973
    %v1976 = vtanh.pop %v1975
    %1978 = vrot.lane.b32.xlu0 %v1976, 64
    %v1979 = vpop.permute.xlu0 %1978
    %v1981 = vmul.f32 %v1960, %v1979
    %v1983 = vrot.slane %v1981, 4
    %1984 = vrot.lane.b32.xlu0 %v1983, 32
    %v1985 = vpop.permute.xlu0 %1984
    %v1986 = vsel %vm301, %v1985, 0
    %1988 = vmatprep.subr.mxu0 0.0
    %1989 = vmatpush1.msra.mxu0 %v1246
    %1990 = vmatprep.subr.mxu0 0.0
    %1991 = vmatpush1.msra.mxu0 %v1247
    %1992 = vmatprep.subr.mxu0 0.0
    %1993 = vmatpush1.msra.mxu0 %v1248
    %1994 = vmatprep.subr.mxu0 0.0
    %1995 = vmatpush1.msra.mxu0 %v1249
    %1996 = vmatprep.subr.mxu0 0.0
    %1997 = vmatpush1.msra.mxu0 0.0
    %1998 = vmatprep.subr.mxu0 0.0
    %1999 = vmatpush1.msra.mxu0 0.0
    %2000 = vmatprep.subr.mxu0 0.0
    %2001 = vmatpush1.msra.mxu0 0.0
    %2002 = vmatprep.subr.mxu0 0.0
    %2003 = vmatpush1.msra.mxu0 0.0
    %2004 = vmatprep.subr.mxu0 0.0
    %2005 = vmatpush1.msra.mxu0 0.0
    %2006 = vmatprep.subr.mxu0 0.0
    %2007 = vmatpush1.msra.mxu0 0.0
    %2008 = vmatprep.subr.mxu0 0.0
    %2009 = vmatpush1.msra.mxu0 0.0
    %2010 = vmatprep.subr.mxu0 0.0
    %2011 = vmatpush1.msra.mxu0 0.0
    %2012 = vmatprep.subr.mxu0 0.0
    %2013 = vmatpush1.msra.mxu0 0.0
    %2014 = vmatprep.subr.mxu0 0.0
    %2015 = vmatpush1.msra.mxu0 0.0
    %2016 = vmatprep.subr.mxu0 0.0
    %2017 = vmatpush1.msra.mxu0 0.0
    %2018 = vmatprep.subr.mxu0 0.0
    %2019 = vmatpush1.msra.mxu0 0.0
    %2020 = vmatprep.subr.mxu0 0.0
    %2021 = vmatpush1.msra.mxu0 0.0
    %2022 = vmatprep.subr.mxu0 0.0
    %2023 = vmatpush1.msra.mxu0 0.0
    %2024 = vmatprep.subr.mxu0 0.0
    %2025 = vmatpush1.msra.mxu0 0.0
    %2026 = vmatprep.subr.mxu0 0.0
    %2027 = vmatpush1.msra.mxu0 0.0
    %2028 = vmatprep.subr.mxu0 0.0
    %2029 = vmatpush1.msra.mxu0 0.0
    %2030 = vmatprep.subr.mxu0 0.0
    %2031 = vmatpush1.msra.mxu0 0.0
    %2032 = vmatprep.subr.mxu0 0.0
    %2033 = vmatpush1.msra.mxu0 0.0
    %2034 = vmatprep.subr.mxu0 0.0
    %2035 = vmatpush1.msra.mxu0 0.0
    %2036 = vmatprep.subr.mxu0 0.0
    %2037 = vmatpush1.msra.mxu0 0.0
    %2038 = vmatprep.subr.mxu0 0.0
    %2039 = vmatpush1.msra.mxu0 0.0
    %2040 = vmatprep.subr.mxu0 0.0
    %2041 = vmatpush1.msra.mxu0 0.0
    %2042 = vmatprep.subr.mxu0 0.0
    %2043 = vmatpush1.msra.mxu0 0.0
    %2044 = vmatprep.subr.mxu0 0.0
    %2045 = vmatpush1.msra.mxu0 0.0
    %2046 = vmatprep.subr.mxu0 0.0
    %2047 = vmatpush1.msra.mxu0 0.0
    %2048 = vmatprep.subr.mxu0 0.0
    %2049 = vmatpush1.msra.mxu0 0.0
    %2050 = vmatprep.subr.mxu0 0.0
    %2051 = vmatpush1.msra.mxu0 0.0
    %2052 = vmatprep.mubr.f32.mxu0 0.0
    %2053 = vmatmul.mubr.f32.gmra.mrb[0].mxu0 %v1986
    %v2054 = vpop.f32.mrb[0].mxu0
    %v2055 = vadd.f32 0.0, %v2054
    %v2056 = vpop.f32.mrb[0].mxu0
    %2057 = vdwg.mxu0
    %v2059 = vrot.slane %v2055, 2
    %v2061 = vadd.f32 %v1243, %v2059
    %v2062 = vxor.u32 %v2061, 2147483648
    %v2063 = vmul.f32 %v2062, 1.442695
    %v2064 = vpow.pop %v2063
    %v2065 = vadd.f32 %v2064, 1.0
    %v2066 = vrcp.pop %v2065
    %v2067 = vmul.f32 1.0, %v2066
    %v2068 = vtanh.pop %v2061
    %v2070 = vrot.slane %v1975, 6
    %v2072 = vmul.f32 %v2067, %v2070
    %2074 = vrot.lane.b32.xlu0 %v2068, 64
    %v2075 = vpop.permute.xlu0 %2074
    %v2077 = vmul.f32 %v2067, %v2075
    %2079 = vrot.lane.b32.xlu0 %v2077, 32
    %v2080 = vpop.permute.xlu0 %2079
    %v2082 = vadd.f32 %v2072, %v2080
    %v2083 = vtanh.pop %v2082
    %2085 = vrot.lane.b32.xlu0 %v2083, 64
    %v2086 = vpop.permute.xlu0 %2085
    %v2088 = vmul.f32 %v2067, %v2086
    %v2089 = vld [vmem:[%s9] sm:$0xff]
    %v2090 = vld [vmem:[%s9 + $0x8] sm:$0xff]
    %v2091 = vld [vmem:[%s9 + $0x10] sm:$0xff]
    %v2092 = vld [vmem:[%s9 + $0x18] sm:$0xff]
    %v2093 = vld [vmem:[%s10] sm:$0x1]
    %v2095 = vlaneseq
    %v2096 = vshrl.u32 %v2095, 7
    %v2097 = vsub.s32 0, %v2096
    %v2098 = vrot.slane %v2093, %v2097
    %v2101 = vrot.slane %v2088, 6
    %2102 = vrot.lane.b32.xlu0 %v2101, 32
    %v2103 = vpop.permute.xlu0 %2102
    %v2104 = vsel %vm301, %v2103, 0
    %2106 = vmatprep.subr.mxu0 0.0
    %2107 = vmatpush1.msra.mxu0 %v2089
    %2108 = vmatprep.subr.mxu0 0.0
    %2109 = vmatpush1.msra.mxu0 %v2090
    %2110 = vmatprep.subr.mxu0 0.0
    %2111 = vmatpush1.msra.mxu0 %v2091
    %2112 = vmatprep.subr.mxu0 0.0
    %2113 = vmatpush1.msra.mxu0 %v2092
    %2114 = vmatprep.subr.mxu0 0.0
    %2115 = vmatpush1.msra.mxu0 0.0
    %2116 = vmatprep.subr.mxu0 0.0
    %2117 = vmatpush1.msra.mxu0 0.0
    %2118 = vmatprep.subr.mxu0 0.0
    %2119 = vmatpush1.msra.mxu0 0.0
    %2120 = vmatprep.subr.mxu0 0.0
    %2121 = vmatpush1.msra.mxu0 0.0
    %2122 = vmatprep.subr.mxu0 0.0
    %2123 = vmatpush1.msra.mxu0 0.0
    %2124 = vmatprep.subr.mxu0 0.0
    %2125 = vmatpush1.msra.mxu0 0.0
    %2126 = vmatprep.subr.mxu0 0.0
    %2127 = vmatpush1.msra.mxu0 0.0
    %2128 = vmatprep.subr.mxu0 0.0
    %2129 = vmatpush1.msra.mxu0 0.0
    %2130 = vmatprep.subr.mxu0 0.0
    %2131 = vmatpush1.msra.mxu0 0.0
    %2132 = vmatprep.subr.mxu0 0.0
    %2133 = vmatpush1.msra.mxu0 0.0
    %2134 = vmatprep.subr.mxu0 0.0
    %2135 = vmatpush1.msra.mxu0 0.0
    %2136 = vmatprep.subr.mxu0 0.0
    %2137 = vmatpush1.msra.mxu0 0.0
    %2138 = vmatprep.subr.mxu0 0.0
    %2139 = vmatpush1.msra.mxu0 0.0
    %2140 = vmatprep.subr.mxu0 0.0
    %2141 = vmatpush1.msra.mxu0 0.0
    %2142 = vmatprep.subr.mxu0 0.0
    %2143 = vmatpush1.msra.mxu0 0.0
    %2144 = vmatprep.subr.mxu0 0.0
    %2145 = vmatpush1.msra.mxu0 0.0
    %2146 = vmatprep.subr.mxu0 0.0
    %2147 = vmatpush1.msra.mxu0 0.0
    %2148 = vmatprep.subr.mxu0 0.0
    %2149 = vmatpush1.msra.mxu0 0.0
    %2150 = vmatprep.subr.mxu0 0.0
    %2151 = vmatpush1.msra.mxu0 0.0
    %2152 = vmatprep.subr.mxu0 0.0
    %2153 = vmatpush1.msra.mxu0 0.0
    %2154 = vmatprep.subr.mxu0 0.0
    %2155 = vmatpush1.msra.mxu0 0.0
    %2156 = vmatprep.subr.mxu0 0.0
    %2157 = vmatpush1.msra.mxu0 0.0
    %2158 = vmatprep.subr.mxu0 0.0
    %2159 = vmatpush1.msra.mxu0 0.0
    %2160 = vmatprep.subr.mxu0 0.0
    %2161 = vmatpush1.msra.mxu0 0.0
    %2162 = vmatprep.subr.mxu0 0.0
    %2163 = vmatpush1.msra.mxu0 0.0
    %2164 = vmatprep.subr.mxu0 0.0
    %2165 = vmatpush1.msra.mxu0 0.0
    %2166 = vmatprep.subr.mxu0 0.0
    %2167 = vmatpush1.msra.mxu0 0.0
    %2168 = vmatprep.subr.mxu0 0.0
    %2169 = vmatpush1.msra.mxu0 0.0
    %2170 = vmatprep.mubr.f32.mxu0 0.0
    %2171 = vmatmul.mubr.f32.gmra.mrb[0].mxu0 %v2104
    %v2172 = vpop.f32.mrb[0].mxu0
    %v2173 = vadd.f32 %v2098, %v2172
    %v2174 = vpop.f32.mrb[0].mxu0
    %2175 = vdwg.mxu0
    %vm2176 = vcmask 25600
    %2177 = vst.msk [vmem:[#allocation10] sm:$0x3] %vm2176, %v2173
    // Predicated region
    $region62: #{tpu_custom_call.1} parent=1 // pred_check
      _
    $region63: #{tpu_custom_call.1} parent=1 // pred_check_branch
      %2179 = sbr.rel (0) target = $region65
    $region64: #{tpu_custom_call.1} parent=1 // pred_region
      %s2181 = ssub.s32 32, 32
      %2182 = vsyncadd [#allocation4], %s2181
      %s2184 = sshll.u32 [#allocation10], 4
      %s2185 = int_to_ptr.vmem [resolvable:$true] %s2184
      %2187 = dma.vmem_to_hbm [thread:$0]  %s2185, 32, %s11, [#allocation4]
    $region65: #{tpu_custom_call.1} parent=1 // pred_fallthru
      _
    // Predicated region
    $region66: #{tpu_custom_call.1} parent=1 // pred_check
      _
    $region67: #{tpu_custom_call.1} parent=1 // pred_check_branch
      %2189 = sbr.rel (0) target = $region69
    $region68: #{tpu_custom_call.1} parent=1 // pred_region
      %2190 = dma.done [#allocation4], 32
    $region69: #{tpu_custom_call.1} parent=1 // pred_fallthru
      _
    %2191 = vsyncpa [#allocation3], 1
    %2192 = vsyncpa [#allocation6], 1
    %2193 = vsyncpa [#allocation9], 1
    %2194 = vsyncpa [#allocation4], 1

</llo_original>
